<compile_context>
chip_gen: v5e
topology: v5e:2x2
jax: 0.10.0
libtpu: 0.0.40
codegen_flags: <defaults>
</compile_context>

<pallas_src>
import jax
import jax.numpy as jnp
from jax import lax
from jax.experimental import pallas as pl
from jax.experimental.pallas import tpu as pltpu

INPUT_SIZE = 512     # fcc is nn.Linear(512, 4) -> input_size = 512
HIDDEN = 128
NUM_CLASSES = 4      # output_class (columns of `c`)
OUT_FCC = 4
NEG = -1e30          # plain Python float -> lowers as a literal, not a captured const


def _make_kernel(G, C, max_n_p):
    """Kernel processing G bags per grid step in a lane-dense layout."""
    GC = G * C
    Gn = G * max_n_p
    inv_sqrt_d = 1.0 / float(HIDDEN) ** 0.5
    sentinel = float(Gn)          # Python float literal (no captured jnp constant)

    def kernel(feat_ref, cm_ref, mask_ref, w1_ref, b1_ref, w2_ref, b2_ref,
               bag_ref, a_ref):
        feat = feat_ref[...]                          # (Gn, D)  bf16
        cm = cm_ref[...]                              # (GC, Gn) f32, NEG outside own bag / padding
        mask = mask_ref[...] > 0.5                    # (GC, Gn) same-bag & valid-instance

        # ---- Q = tanh(relu(feat @ W1 + b1) @ W2 + b2)  (bf16 MXU, f32 accum) ----
        h = jnp.dot(feat, w1_ref[...], preferred_element_type=jnp.float32) + b1_ref[...]
        h = jnp.maximum(h, 0.0)
        Q = jnp.tanh(jnp.dot(h.astype(jnp.bfloat16), w2_ref[...],
                             preferred_element_type=jnp.float32) + b2_ref[...])   # (Gn,128) f32
        Qb = Q.astype(jnp.bfloat16)

        # ---- per-(bag,class) critical instance: equality argmax on exact f32 cm ----
        max_vals = jnp.max(cm, axis=-1, keepdims=True)                   # (GC, 1)
        is_max = jnp.logical_and(cm == max_vals, mask)
        col_f = lax.broadcasted_iota(jnp.int32, (GC, Gn), 1).astype(jnp.float32)
        cand = jnp.where(is_max, col_f, sentinel)
        arg = jnp.min(cand, axis=-1, keepdims=True)                      # first (lowest-index) max
        sel = (col_f == arg).astype(jnp.bfloat16)                        # exact 0/1 one-hot rows

        # critical-instance projection: row selection commutes with the row-wise q()
        q_max = jnp.dot(sel, Qb, preferred_element_type=jnp.float32)     # (GC, 128)

        # ---- attention: softmax over instances along the lane axis (bf16 MXU) ----
        # TODO(synk): if the Mosaic dump shows a materialized transpose copy of Qb
        # for this dot_general, pre-transpose Qb explicitly (XLU slot has slack).
        scores = lax.dot_general(q_max.astype(jnp.bfloat16), Qb,
                                 (((1,), (1,)), ((), ())),
                                 preferred_element_type=jnp.float32)     # (GC, Gn)
        scores = jnp.where(mask, scores * inv_sqrt_d, NEG)
        m = jnp.max(scores, axis=-1, keepdims=True)
        e = jnp.exp(scores - m)
        denom = jnp.sum(e, axis=-1, keepdims=True)
        A = e * pl.reciprocal(denom, approx=True)                        # (GC, Gn) f32

        # ---- bag embedding B = A @ V  (V = Identity(feat), passing_v=False) ----
        Bmat = jnp.dot(A.astype(jnp.bfloat16), feat,
                       preferred_element_type=jnp.float32)               # (GC, D)

        a_ref[...] = A.astype(jnp.bfloat16)      # >99% discarded -> halve writeback
        bag_ref[...] = Bmat

    return kernel


def bclassifier_forward(feats, c, len_list, params):
    num_bags = len(len_list)
    D = feats.shape[1]
    C = c.shape[1]
    max_n = max(int(n) for n in len_list)

    # --- packing heuristic: ~256 rows/step, GC <= ~128, >= 2 grid steps ---
    max_n_p = ((max_n + 7) // 8) * 8
    rows_cap = max(1, 256 // max_n_p)            # fill the 256-wide MXU on v6e/v7x
    gc_cap = max(1, 128 // max(C, 1))            # cross-bag masked waste grows as G^2
    G = max(1, min(num_bags, rows_cap, gc_cap))
    if num_bags > 1:
        G = min(G, (num_bags + 1) // 2)          # keep >= 2 grid steps (v7x: 2 TCs)
    num_bags_p = ((num_bags + G - 1) // G) * G
    num_groups = num_bags_p // G
    Gn = G * max_n_p
    GC = G * C

    # --- vectorized ragged -> padded packing (single gather; no per-bag loop) ---
    lens = jnp.asarray(len_list, dtype=jnp.int32)
    lens = jnp.pad(lens, (0, num_bags_p - num_bags))
    starts = jnp.concatenate([jnp.zeros((1,), jnp.int32),
                              jnp.cumsum(lens)[:-1].astype(jnp.int32)])
    pos = jnp.arange(max_n_p, dtype=jnp.int32)
    valid = pos[None, :] < lens[:, None]                               # (B_p, max_n_p)
    gidx = jnp.where(valid, starts[:, None] + pos[None, :], 0)
    feat_bags = jnp.where(valid[..., None], feats[gidx], 0.0)          # (B_p, max_n_p, D) f32
    c_bags = jnp.where(valid[..., None], c[gidx], 0.0)                 # (B_p, max_n_p, C) f32

    feat_groups = feat_bags.reshape(num_groups, Gn, D).astype(jnp.bfloat16)

    # --- host-built lane-dense cm (exact f32, NEG-filled) and combined mask ---
    c_g = c_bags.reshape(num_groups, G, max_n_p, C)                    # [grp, bag, inst, cls]
    valid_g = valid.reshape(num_groups, G, max_n_p)
    cT = c_g.transpose(0, 3, 1, 2)                                     # [grp, cls, bag_col, inst]
    vals = jnp.broadcast_to(cT[:, None, :, :, :],
                            (num_groups, G, C, G, max_n_p))            # [grp, bag_row, cls, bag_col, inst]
    same_bag = jnp.eye(G, dtype=bool)[None, :, None, :, None]
    vmask = valid_g[:, None, None, :, :]
    mask5 = jnp.broadcast_to(jnp.logical_and(same_bag, vmask),
                             (num_groups, G, C, G, max_n_p))
    cm_groups = jnp.where(mask5, vals, NEG).reshape(num_groups, GC, Gn).astype(jnp.float32)
    mask_groups = mask5.reshape(num_groups, GC, Gn).astype(jnp.bfloat16)

    w1 = params["w1"].astype(jnp.bfloat16)
    w2 = params["w2"].astype(jnp.bfloat16)
    b1 = params["b1"].astype(jnp.float32)
    b2 = params["b2"].astype(jnp.float32)

    kernel = _make_kernel(G, C, max_n_p)

    grid_spec = pltpu.PrefetchScalarGridSpec(
        num_scalar_prefetch=0,
        grid=(num_groups,),
        in_specs=[
            pl.BlockSpec((None, Gn, D), lambda g: (g, 0, 0)),          # packed features (bf16)
            pl.BlockSpec((None, GC, Gn), lambda g: (g, 0, 0)),         # cm (f32, NEG-filled)
            pl.BlockSpec((None, GC, Gn), lambda g: (g, 0, 0)),         # combined mask (bf16)
            pl.BlockSpec((D, HIDDEN), lambda g: (0, 0)),               # W1
            pl.BlockSpec((1, HIDDEN), lambda g: (0, 0)),               # b1
            pl.BlockSpec((HIDDEN, HIDDEN), lambda g: (0, 0)),          # W2
            pl.BlockSpec((1, HIDDEN), lambda g: (0, 0)),               # b2
        ],
        out_specs=(
            pl.BlockSpec((None, GC, D), lambda g: (g, 0, 0)),          # bag embeddings (f32)
            pl.BlockSpec((None, GC, Gn), lambda g: (g, 0, 0)),         # attention A (bf16)
        ),
    )
    out_shape = (
        jax.ShapeDtypeStruct((num_groups, GC, D), jnp.float32),
        jax.ShapeDtypeStruct((num_groups, GC, Gn), jnp.bfloat16),
    )

    bag_blk, A_blk = pl.pallas_call(
        kernel,
        grid_spec=grid_spec,
        out_shape=out_shape,
        compiler_params=pltpu.CompilerParams(
            dimension_semantics=("parallel",)),   # groups are independent (v7x: 2 TCs)
    )(feat_groups, cm_groups, mask_groups, w1, b1, w2, b2)

    bag_feats = bag_blk.reshape(num_bags_p, C, D)[:num_bags]           # (B, C, D)

    # fcc + max_c are tiny & lane-poor: keep them as fused XLA ops outside the kernel.
    logits = bag_feats @ params["wf"] + params["bf"]                   # (B, C, 4)

    c_masked = jnp.where(valid[:num_bags, :, None], c_bags[:num_bags], -jnp.inf)
    idx = jnp.argmax(c_masked, axis=1)                                 # (B, C)
    max_c = jnp.take_along_axis(c_bags[:num_bags], idx[:, :, None], axis=1)  # (B, C, C)

    # PyTorch returns the *last* bag's attention matrix A with shape (bag_len, C)
    last = num_bags - 1
    grp, g_loc = last // G, last % G
    n_last = int(len_list[-1])
    A_last = A_blk[grp,
                   g_loc * C:(g_loc + 1) * C,
                   g_loc * max_n_p: g_loc * max_n_p + n_last].T.astype(jnp.float32)

    return logits, max_c, A_last, bag_feats


# ----- deterministic parameter init (Linear(in,out) stored as (in, out)) -----
def init_params(key):
    def lin(k, fan_in, fan_out):
        bound = 1.0 / float(fan_in) ** 0.5
        kw, kb = jax.random.split(k)
        w = jax.random.uniform(kw, (fan_in, fan_out), jnp.float32, -bound, bound)
        b = jax.random.uniform(kb, (1, fan_out), jnp.float32, -bound, bound)
        return w, b
    k1, k2, k3 = jax.random.split(key, 3)
    w1, b1 = lin(k1, INPUT_SIZE, HIDDEN)
    w2, b2 = lin(k2, HIDDEN, HIDDEN)
    wf, bf = lin(k3, INPUT_SIZE, OUT_FCC)
    return dict(w1=w1, b1=b1, w2=w2, b2=b2, wf=wf, bf=bf)


# ----- pure-JAX f32 reference mirroring the PyTorch forward loop -----
def _q_fn(x, p):
    h = jnp.maximum(x @ p["w1"] + p["b1"], 0.0)
    return jnp.tanh(h @ p["w2"] + p["b2"])


def ref_forward(feats, c, len_list, p):
    off, bags, maxcs, A_last = 0, [], [], None
    for n in len_list:
        feat, one_c = feats[off:off + n], c[off:off + n]
        V = feat                                    # v = Identity (passing_v=False)
        Q = _q_fn(feat, p)
        idx = jnp.argmax(one_c, axis=0)             # == torch.sort desc, row 0
        maxcs.append(one_c[idx])
        q_max = _q_fn(feat[idx], p)
        A = Q @ q_max.T
        A = jax.nn.softmax(A / jnp.sqrt(jnp.float32(Q.shape[1])), axis=0)
        bags.append(A.T @ V)
        A_last = A
        off += n
    bag_feats = jnp.stack(bags)
    max_c = jnp.stack(maxcs)
    logits = bag_feats @ p["wf"] + p["bf"]
    return logits, max_c, A_last, bag_feats


if __name__ == "__main__":
    key = jax.random.PRNGKey(0)
    kp, kf, kc = jax.random.split(key, 3)
    params = init_params(kp)

    # 18 small ragged bags -> packed into 2 grid steps (>= 2 for v7x's 2 TCs).
    len_list = [8, 6, 3, 8, 5, 7, 2, 8, 4, 6, 8, 1, 5, 8, 7, 3, 6, 4]
    total = sum(len_list)
    feats = jax.random.normal(kf, (total, INPUT_SIZE), jnp.float32)
    c = jax.random.normal(kc, (total, NUM_CLASSES), jnp.float32)

    logits, max_c, A_last, bag_feats = bclassifier_forward(feats, c, len_list, params)
    jax.block_until_ready((logits, max_c, A_last, bag_feats))

    r_logits, r_max_c, r_A, r_bag = ref_forward(feats, c, len_list, params)
    # Tolerance accounts for bf16 inputs to the MXU matmuls (f32 accumulation)
    # and the bf16 A writeback.
    tol = dict(atol=2e-2, rtol=2e-2)
    ok = (jnp.allclose(logits, r_logits, **tol)
          and jnp.allclose(max_c, r_max_c, **tol)
          and jnp.allclose(A_last, r_A, **tol)
          and jnp.allclose(bag_feats, r_bag, **tol))
    assert bool(ok), "Pallas kernel output mismatch vs JAX reference"
    print("KERNEL_OK")
</pallas_src>

<mosaic_0001>
module attributes {stable_mosaic.version = 11 : i64} {
  func.func @kernel(%arg0: i32, %arg1: memref<1x72x512xbf16, #tpu.memory_space<vmem>>, %arg2: memref<1x36x72xf32, #tpu.memory_space<vmem>>, %arg3: memref<1x36x72xbf16, #tpu.memory_space<vmem>>, %arg4: memref<512x128xbf16, #tpu.memory_space<vmem>>, %arg5: memref<1x128xf32, #tpu.memory_space<vmem>>, %arg6: memref<128x128xbf16, #tpu.memory_space<vmem>>, %arg7: memref<1x128xf32, #tpu.memory_space<vmem>>, %arg8: memref<1x36x512xf32, #tpu.memory_space<vmem>>, %arg9: memref<1x36x72xbf16, #tpu.memory_space<vmem>>) attributes {dimension_semantics = [#tpu.dimension_semantics<parallel>], iteration_bounds = array<i64: 2>, scalar_prefetch = 0 : i64, scratch_operands = 0 : i64, tpu.core_type = #tpu.core_type<tc>, window_params = [{transform_indices = @transform_0, window_bounds = array<i64: 1, 72, 512>}, {transform_indices = @transform_1, window_bounds = array<i64: 1, 36, 72>}, {transform_indices = @transform_2, window_bounds = array<i64: 1, 36, 72>}, {pipeline_mode = #tpu.pipeline_mode<synchronous>, transform_indices = @transform_3, window_bounds = array<i64: 512, 128>}, {pipeline_mode = #tpu.pipeline_mode<synchronous>, transform_indices = @transform_4, window_bounds = array<i64: 1, 128>}, {pipeline_mode = #tpu.pipeline_mode<synchronous>, transform_indices = @transform_5, window_bounds = array<i64: 128, 128>}, {pipeline_mode = #tpu.pipeline_mode<synchronous>, transform_indices = @transform_6, window_bounds = array<i64: 1, 128>}, {transform_indices = @transform_7, window_bounds = array<i64: 1, 36, 512>}, {transform_indices = @transform_8, window_bounds = array<i64: 1, 36, 72>}]} {
    %c0 = arith.constant 0 : index
    %c0_0 = arith.constant 0 : index
    %c0_1 = arith.constant 0 : index
    %0 = vector.load %arg1[%c0, %c0_0, %c0_1] : memref<1x72x512xbf16, #tpu.memory_space<vmem>>, vector<1x72x512xbf16>
    %1 = vector.shape_cast %0 : vector<1x72x512xbf16> to vector<72x512xbf16>
    %c0_2 = arith.constant 0 : index
    %c0_3 = arith.constant 0 : index
    %c0_4 = arith.constant 0 : index
    %2 = vector.load %arg2[%c0_2, %c0_3, %c0_4] : memref<1x36x72xf32, #tpu.memory_space<vmem>>, vector<1x36x72xf32>
    %3 = vector.shape_cast %2 : vector<1x36x72xf32> to vector<36x72xf32>
    %c0_5 = arith.constant 0 : index
    %c0_6 = arith.constant 0 : index
    %c0_7 = arith.constant 0 : index
    %4 = vector.load %arg3[%c0_5, %c0_6, %c0_7] : memref<1x36x72xbf16, #tpu.memory_space<vmem>>, vector<1x36x72xbf16>
    %5 = vector.shape_cast %4 : vector<1x36x72xbf16> to vector<36x72xbf16>
    %cst = arith.constant 5.000000e-01 : bf16
    %6 = vector.broadcast %cst : bf16 to vector<36x72xbf16>
    %7 = arith.cmpf ogt, %5, %6 : vector<36x72xbf16>
    %c0_8 = arith.constant 0 : index
    %c0_9 = arith.constant 0 : index
    %8 = vector.load %arg4[%c0_8, %c0_9] : memref<512x128xbf16, #tpu.memory_space<vmem>>, vector<512x128xbf16>
    %cst_10 = arith.constant dense<0.000000e+00> : vector<72x128xf32>
    %9 = tpu.matmul %1, %8, %cst_10 {dimension_numbers = #tpu.dot_dimension_numbers<[1], [0], [0], [1], [0, 0, 1, 1], [], []>} : vector<72x512xbf16>, vector<512x128xbf16>, vector<72x128xf32> -> vector<72x128xf32>
    %c0_11 = arith.constant 0 : index
    %c0_12 = arith.constant 0 : index
    %10 = vector.load %arg5[%c0_11, %c0_12] : memref<1x128xf32, #tpu.memory_space<vmem>>, vector<1x128xf32>
    %11 = vector.broadcast %10 : vector<1x128xf32> to vector<72x128xf32>
    %12 = arith.addf %9, %11 : vector<72x128xf32>
    %cst_13 = arith.constant 0.000000e+00 : f32
    %13 = vector.broadcast %cst_13 : f32 to vector<72x128xf32>
    %14 = arith.maximumf %12, %13 : vector<72x128xf32>
    %15 = arith.truncf %14 : vector<72x128xf32> to vector<72x128xbf16>
    %c0_14 = arith.constant 0 : index
    %c0_15 = arith.constant 0 : index
    %16 = vector.load %arg6[%c0_14, %c0_15] : memref<128x128xbf16, #tpu.memory_space<vmem>>, vector<128x128xbf16>
    %cst_16 = arith.constant dense<0.000000e+00> : vector<72x128xf32>
    %17 = tpu.matmul %15, %16, %cst_16 {dimension_numbers = #tpu.dot_dimension_numbers<[1], [0], [0], [1], [0, 0, 1, 1], [], []>} : vector<72x128xbf16>, vector<128x128xbf16>, vector<72x128xf32> -> vector<72x128xf32>
    %c0_17 = arith.constant 0 : index
    %c0_18 = arith.constant 0 : index
    %18 = vector.load %arg7[%c0_17, %c0_18] : memref<1x128xf32, #tpu.memory_space<vmem>>, vector<1x128xf32>
    %19 = vector.broadcast %18 : vector<1x128xf32> to vector<72x128xf32>
    %20 = arith.addf %17, %19 : vector<72x128xf32>
    %21 = math.tanh %20 : vector<72x128xf32>
    %22 = arith.truncf %21 : vector<72x128xf32> to vector<72x128xbf16>
    %cst_19 = arith.constant dense<0xFF800000> : vector<36xf32>
    %23 = vector.multi_reduction <maximumf>, %3, %cst_19 [1] : vector<36x72xf32> to vector<36xf32>
    %24 = vector.shape_cast %23 : vector<36xf32> to vector<36x1xf32>
    %25 = vector.broadcast %24 : vector<36x1xf32> to vector<36x72xf32>
    %26 = arith.cmpf oeq, %3, %25 : vector<36x72xf32>
    %27 = arith.andi %26, %7 : vector<36x72xi1>
    %28 = tpu.iota {dimensions = array<i32: 1>} : vector<36x72xi32>
    %29 = arith.sitofp %28 : vector<36x72xi32> to vector<36x72xf32>
    %cst_20 = arith.constant 7.200000e+01 : f32
    %30 = vector.broadcast %cst_20 : f32 to vector<36x72xf32>
    %31 = arith.select %27, %29, %30 : vector<36x72xi1>, vector<36x72xf32>
    %cst_21 = arith.constant dense<0x7F800000> : vector<36xf32>
    %32 = vector.multi_reduction <minimumf>, %31, %cst_21 [1] : vector<36x72xf32> to vector<36xf32>
    %33 = vector.shape_cast %32 : vector<36xf32> to vector<36x1xf32>
    %34 = vector.broadcast %33 : vector<36x1xf32> to vector<36x72xf32>
    %35 = arith.cmpf oeq, %29, %34 : vector<36x72xf32>
    %36 = arith.extui %35 : vector<36x72xi1> to vector<36x72xi32>
    %37 = arith.sitofp %36 : vector<36x72xi32> to vector<36x72xf32>
    %38 = arith.truncf %37 : vector<36x72xf32> to vector<36x72xbf16>
    %cst_22 = arith.constant dense<0.000000e+00> : vector<36x128xf32>
    %39 = tpu.matmul %38, %22, %cst_22 {dimension_numbers = #tpu.dot_dimension_numbers<[1], [0], [0], [1], [0, 0, 1, 1], [], []>} : vector<36x72xbf16>, vector<72x128xbf16>, vector<36x128xf32> -> vector<36x128xf32>
    %40 = arith.truncf %39 : vector<36x128xf32> to vector<36x128xbf16>
    %cst_23 = arith.constant dense<0.000000e+00> : vector<36x72xf32>
    %41 = tpu.matmul %40, %22, %cst_23 {dimension_numbers = #tpu.dot_dimension_numbers<[1], [1], [0], [0], [0, 0, 1, 0], [], []>} : vector<36x128xbf16>, vector<72x128xbf16>, vector<36x72xf32> -> vector<36x72xf32>
    %cst_24 = arith.constant 0.0883883461 : f32
    %42 = vector.broadcast %cst_24 : f32 to vector<36x72xf32>
    %43 = arith.mulf %41, %42 : vector<36x72xf32>
    %cst_25 = arith.constant -1.000000e+30 : f32
    %44 = vector.broadcast %cst_25 : f32 to vector<36x72xf32>
    %45 = arith.select %7, %43, %44 : vector<36x72xi1>, vector<36x72xf32>
    %cst_26 = arith.constant dense<0xFF800000> : vector<36xf32>
    %46 = vector.multi_reduction <maximumf>, %45, %cst_26 [1] : vector<36x72xf32> to vector<36xf32>
    %47 = vector.shape_cast %46 : vector<36xf32> to vector<36x1xf32>
    %48 = vector.broadcast %47 : vector<36x1xf32> to vector<36x72xf32>
    %49 = arith.subf %45, %48 : vector<36x72xf32>
    %50 = math.exp %49 : vector<36x72xf32>
    %cst_27 = arith.constant dense<0.000000e+00> : vector<36xf32>
    %51 = vector.multi_reduction <add>, %50, %cst_27 [1] : vector<36x72xf32> to vector<36xf32>
    %52 = vector.shape_cast %51 : vector<36xf32> to vector<36x1xf32>
    %53 = tpu.reciprocal %52 {approx = true} : vector<36x1xf32> -> vector<36x1xf32>
    %54 = vector.broadcast %53 : vector<36x1xf32> to vector<36x72xf32>
    %55 = arith.mulf %50, %54 : vector<36x72xf32>
    %56 = arith.truncf %55 : vector<36x72xf32> to vector<36x72xbf16>
    %cst_28 = arith.constant dense<0.000000e+00> : vector<36x512xf32>
    %57 = tpu.matmul %56, %1, %cst_28 {dimension_numbers = #tpu.dot_dimension_numbers<[1], [0], [0], [1], [0, 0, 1, 1], [], []>} : vector<36x72xbf16>, vector<72x512xbf16>, vector<36x512xf32> -> vector<36x512xf32>
    %58 = arith.truncf %55 : vector<36x72xf32> to vector<36x72xbf16>
    %c0_29 = arith.constant 0 : index
    %c0_30 = arith.constant 0 : index
    %c0_31 = arith.constant 0 : index
    %59 = vector.load %arg9[%c0_29, %c0_30, %c0_31] : memref<1x36x72xbf16, #tpu.memory_space<vmem>>, vector<1x36x72xbf16>
    %60 = vector.shape_cast %59 : vector<1x36x72xbf16> to vector<36x72xbf16>
    %61 = vector.shape_cast %58 : vector<36x72xbf16> to vector<1x36x72xbf16>
    tpu.vector_store %arg9[%c0_29, %c0_30, %c0_31], %61 {strides = array<i32>} : memref<1x36x72xbf16, #tpu.memory_space<vmem>>, vector<1x36x72xbf16>,
    %c0_32 = arith.constant 0 : index
    %c0_33 = arith.constant 0 : index
    %c0_34 = arith.constant 0 : index
    %62 = vector.load %arg8[%c0_32, %c0_33, %c0_34] : memref<1x36x512xf32, #tpu.memory_space<vmem>>, vector<1x36x512xf32>
    %63 = vector.shape_cast %62 : vector<1x36x512xf32> to vector<36x512xf32>
    %64 = vector.shape_cast %57 : vector<36x512xf32> to vector<1x36x512xf32>
    tpu.vector_store %arg8[%c0_32, %c0_33, %c0_34], %64 {strides = array<i32>} : memref<1x36x512xf32, #tpu.memory_space<vmem>>, vector<1x36x512xf32>,
    return
  }
  func.func @transform_0(%arg0: i32) -> (i32, i32, i32) {
    %c0_i32 = arith.constant 0 : i32
    %c0_i32_0 = arith.constant 0 : i32
    %c0_i32_1 = arith.constant 0 : i32
    return %arg0, %c0_i32, %c0_i32_0 : i32, i32, i32
  }
  func.func @transform_1(%arg0: i32) -> (i32, i32, i32) {
    %c0_i32 = arith.constant 0 : i32
    %c0_i32_0 = arith.constant 0 : i32
    %c0_i32_1 = arith.constant 0 : i32
    return %arg0, %c0_i32, %c0_i32_0 : i32, i32, i32
  }
  func.func @transform_2(%arg0: i32) -> (i32, i32, i32) {
    %c0_i32 = arith.constant 0 : i32
    %c0_i32_0 = arith.constant 0 : i32
    %c0_i32_1 = arith.constant 0 : i32
    return %arg0, %c0_i32, %c0_i32_0 : i32, i32, i32
  }
  func.func @transform_3(%arg0: i32) -> (i32, i32) {
    %c0_i32 = arith.constant 0 : i32
    %c0_i32_0 = arith.constant 0 : i32
    %c0_i32_1 = arith.constant 0 : i32
    return %c0_i32, %c0_i32_0 : i32, i32
  }
  func.func @transform_4(%arg0: i32) -> (i32, i32) {
    %c0_i32 = arith.constant 0 : i32
    %c0_i32_0 = arith.constant 0 : i32
    %c0_i32_1 = arith.constant 0 : i32
    return %c0_i32, %c0_i32_0 : i32, i32
  }
  func.func @transform_5(%arg0: i32) -> (i32, i32) {
    %c0_i32 = arith.constant 0 : i32
    %c0_i32_0 = arith.constant 0 : i32
    %c0_i32_1 = arith.constant 0 : i32
    return %c0_i32, %c0_i32_0 : i32, i32
  }
  func.func @transform_6(%arg0: i32) -> (i32, i32) {
    %c0_i32 = arith.constant 0 : i32
    %c0_i32_0 = arith.constant 0 : i32
    %c0_i32_1 = arith.constant 0 : i32
    return %c0_i32, %c0_i32_0 : i32, i32
  }
  func.func @transform_7(%arg0: i32) -> (i32, i32, i32) {
    %c0_i32 = arith.constant 0 : i32
    %c0_i32_0 = arith.constant 0 : i32
    %c0_i32_1 = arith.constant 0 : i32
    return %arg0, %c0_i32, %c0_i32_0 : i32, i32, i32
  }
  func.func @transform_8(%arg0: i32) -> (i32, i32, i32) {
    %c0_i32 = arith.constant 0 : i32
    %c0_i32_0 = arith.constant 0 : i32
    %c0_i32_1 = arith.constant 0 : i32
    return %arg0, %c0_i32, %c0_i32_0 : i32, i32, i32
  }
}

</mosaic_0001>

<llo_original>
// kernel: tpu_custom_call.1
$region0: #{tpu_custom_call.1}
  #allocation0 [shape = 'u32[]', space=smem, size = 0x4, offset = 0x4, fixed_abs, tag = 'smem constant byte address 0x4 - core index']
  #allocation1 [shape = 'u32[72,128]{1,0:T(1,128)}', space=vmem, size = 0x9000, scoped, tag = 'internal scratch']
  %s0 = inlined_call_operand.hbm [shape: bf16[2,72,512], index: 0, kind: input, shape index: {}]
  %s1 = inlined_call_operand.vmem [shape: f32[2,36,72], index: 1, kind: input, shape index: {}]
  %s2 = inlined_call_operand.vmem [shape: bf16[2,36,72], index: 2, kind: input, shape index: {}]
  %s3 = inlined_call_operand.hbm [shape: bf16[512,128], index: 3, kind: input, shape index: {}]
  %s4 = inlined_call_operand.vmem [shape: f32[1,128], index: 4, kind: input, shape index: {}]
  %s5 = inlined_call_operand.vmem [shape: bf16[128,128], index: 5, kind: input, shape index: {}]
  %s6 = inlined_call_operand.vmem [shape: f32[1,128], index: 6, kind: input, shape index: {}]
  %s7 = inlined_call_operand.vmem [shape: f32[2,36,512], index: 7, kind: output, shape index: {0}]
  %s8 = inlined_call_operand.vmem [shape: bf16[2,36,72], index: 8, kind: output, shape index: {1}]
  %9 = xla_tuple %s7, %s8
  %s10 = sld [smem:[#allocation0]]
  $region77: #{tpu_custom_call.1} parent=0
    _
  %s12 = ssub.s32 1, %s10
  %s13 = scalar_select 0, %s12, %s10
  $region1: #{tpu_custom_call.1} parent=0
    #allocation2 [shape = 'u8[147456]{0}', space=vmem, size = 0x24000, scoped, tag = 'input window, operand 0']
    #allocation3 [shape = 's32[2]{0}', space=sflag, size = 0x8, scoped, tag = 'scoped memory for tpu_custom_call.1']
    #allocation4 [shape = 'u8[131072]{0}', space=vmem, size = 0x20000, scoped, tag = 'input window, operand 3, single buffered']
    #allocation5 [shape = 's32[1]{0}', space=sflag, size = 0x4, scoped, tag = 'scoped memory for tpu_custom_call.1']
    %14 = vsyncpa [#allocation3], 0
    %s15 = scalar_lea.sflag [#allocation3], 1
    %16 = vsyncpa %s15, 0
    %17 = vsyncpa [#allocation5], 0
    loop: start=0, step=1, limit=4
    $region2: #{tpu_custom_call.1} parent=1 // loop_pre_header
      _
    $region3: #{tpu_custom_call.1} parent=1 // loop_header
      %s19 = sphi 0, %s23
      %p20 = scmp.ge.s32.totalorder %s19, 4
      %s29 = sphi 0, %s31
      %s32 = sphi 0, %s29
      %s33 = sphi 0, %s32
      %s49 = sphi 0, %s33
      %s55 = sphi 0, %s57
      %s58 = sphi 0, %s55
      %s59 = sphi 0, %s58
      %s75 = sphi 0, %s59
      %s81 = sphi 0, %s83
      %s84 = sphi 0, %s81
      %s85 = sphi 0, %s84
      %s101 = sphi 0, %s85
      %s105 = sphi 0, %s105
      %s107 = sphi 0, %s105
      %s108 = sphi 0, %s107
      %s122 = sphi 0, %s108
      %s126 = sphi 0, %s126
      %s128 = sphi 0, %s126
      %s129 = sphi 0, %s128
      %s143 = sphi 0, %s129
      %s147 = sphi 0, %s147
      %s149 = sphi 0, %s147
      %s150 = sphi 0, %s149
      %s164 = sphi 0, %s150
      %s168 = sphi 0, %s168
      %s170 = sphi 0, %s168
      %s171 = sphi 0, %s170
      %s185 = sphi 0, %s171
      %s191 = sphi 0, %s193
      %s194 = sphi 0, %s191
      %s195 = sphi 0, %s194
      %s211 = sphi 0, %s195
      %s217 = sphi 0, %s219
      %s220 = sphi 0, %s217
      %s221 = sphi 0, %s220
      %s237 = sphi 0, %s221
    $region4: #{tpu_custom_call.1} parent=1 // loop_header_branch
      %22 = sbr.rel (%p20) target = $region8
    $region5: #{tpu_custom_call.1} parent=1 // loop_body
      %s24 = ssub.s32 %s19, 1
      %s25 = ssub.s32 %s19, 2
      %s26 = sadd.s32 %s19, 1
      %s27 = ssub.s32 %s19, %s26
      %p28 = scmp.eq.s32.totalorder %s27, 0
      %s30 = sadd.s32 %s29, 1
      %s31 = scalar_select %p28, %s29, %s30
      %p34 = pneg %p28
      %p35 = scmp.eq.s32.totalorder %s19, 1
      %p36 = por %p34, %p35
      %p37 = scmp.ne.s32.totalorder %s29, %s32
      %p38 = scmp.eq.s32.totalorder %s19, 0
      %p39 = por %p37, %p38
      %p40 = scmp.ne.s32.totalorder %s29, %s32
      %p41 = scmp.eq.s32.totalorder %s24, 1
      %p42 = por %p40, %p41
      %p43 = scmp.ne.s32.totalorder %s32, %s33
      %p44 = scmp.eq.s32.totalorder %s24, 0
      %p45 = por %p43, %p44
      %p46 = scmp.ne.s32.totalorder %s32, %s33
      %p47 = scmp.eq.s32.totalorder %s25, 1
      %p48 = por %p46, %p47
      %p50 = scmp.ne.s32.totalorder %s33, %s49
      %p51 = scmp.eq.s32.totalorder %s25, 0
      %p52 = por %p50, %p51
      %s53 = ssub.s32 %s19, %s26
      %p54 = scmp.eq.s32.totalorder %s53, 0
      %s56 = sadd.s32 %s55, 1
      %s57 = scalar_select %p54, %s55, %s56
      %p60 = pneg %p54
      %p61 = scmp.eq.s32.totalorder %s19, 1
      %p62 = por %p60, %p61
      %p63 = scmp.ne.s32.totalorder %s55, %s58
      %p64 = scmp.eq.s32.totalorder %s19, 0
      %p65 = por %p63, %p64
      %p66 = scmp.ne.s32.totalorder %s55, %s58
      %p67 = scmp.eq.s32.totalorder %s24, 1
      %p68 = por %p66, %p67
      %p69 = scmp.ne.s32.totalorder %s58, %s59
      %p70 = scmp.eq.s32.totalorder %s24, 0
      %p71 = por %p69, %p70
      %p72 = scmp.ne.s32.totalorder %s58, %s59
      %p73 = scmp.eq.s32.totalorder %s25, 1
      %p74 = por %p72, %p73
      %p76 = scmp.ne.s32.totalorder %s59, %s75
      %p77 = scmp.eq.s32.totalorder %s25, 0
      %p78 = por %p76, %p77
      %s79 = ssub.s32 %s19, %s26
      %p80 = scmp.eq.s32.totalorder %s79, 0
      %s82 = sadd.s32 %s81, 1
      %s83 = scalar_select %p80, %s81, %s82
      %p86 = pneg %p80
      %p87 = scmp.eq.s32.totalorder %s19, 1
      %p88 = por %p86, %p87
      %p89 = scmp.ne.s32.totalorder %s81, %s84
      %p90 = scmp.eq.s32.totalorder %s19, 0
      %p91 = por %p89, %p90
      %p92 = scmp.ne.s32.totalorder %s81, %s84
      %p93 = scmp.eq.s32.totalorder %s24, 1
      %p94 = por %p92, %p93
      %p95 = scmp.ne.s32.totalorder %s84, %s85
      %p96 = scmp.eq.s32.totalorder %s24, 0
      %p97 = por %p95, %p96
      %p98 = scmp.ne.s32.totalorder %s84, %s85
      %p99 = scmp.eq.s32.totalorder %s25, 1
      %p100 = por %p98, %p99
      %p102 = scmp.ne.s32.totalorder %s85, %s101
      %p103 = scmp.eq.s32.totalorder %s25, 0
      %p104 = por %p102, %p103
      %s106 = sadd.s32 %s105, 1
      %p109 = scmp.eq.s32.totalorder %s19, 1
      %p110 = scmp.ne.s32.totalorder %s105, %s107
      %p111 = scmp.eq.s32.totalorder %s19, 0
      %p112 = por %p110, %p111
      %p113 = scmp.ne.s32.totalorder %s105, %s107
      %p114 = scmp.eq.s32.totalorder %s24, 1
      %p115 = por %p113, %p114
      %p116 = scmp.ne.s32.totalorder %s107, %s108
      %p117 = scmp.eq.s32.totalorder %s24, 0
      %p118 = por %p116, %p117
      %p119 = scmp.ne.s32.totalorder %s107, %s108
      %p120 = scmp.eq.s32.totalorder %s25, 1
      %p121 = por %p119, %p120
      %p123 = scmp.ne.s32.totalorder %s108, %s122
      %p124 = scmp.eq.s32.totalorder %s25, 0
      %p125 = por %p123, %p124
      %s127 = sadd.s32 %s126, 1
      %p130 = scmp.eq.s32.totalorder %s19, 1
      %p131 = scmp.ne.s32.totalorder %s126, %s128
      %p132 = scmp.eq.s32.totalorder %s19, 0
      %p133 = por %p131, %p132
      %p134 = scmp.ne.s32.totalorder %s126, %s128
      %p135 = scmp.eq.s32.totalorder %s24, 1
      %p136 = por %p134, %p135
      %p137 = scmp.ne.s32.totalorder %s128, %s129
      %p138 = scmp.eq.s32.totalorder %s24, 0
      %p139 = por %p137, %p138
      %p140 = scmp.ne.s32.totalorder %s128, %s129
      %p141 = scmp.eq.s32.totalorder %s25, 1
      %p142 = por %p140, %p141
      %p144 = scmp.ne.s32.totalorder %s129, %s143
      %p145 = scmp.eq.s32.totalorder %s25, 0
      %p146 = por %p144, %p145
      %s148 = sadd.s32 %s147, 1
      %p151 = scmp.eq.s32.totalorder %s19, 1
      %p152 = scmp.ne.s32.totalorder %s147, %s149
      %p153 = scmp.eq.s32.totalorder %s19, 0
      %p154 = por %p152, %p153
      %p155 = scmp.ne.s32.totalorder %s147, %s149
      %p156 = scmp.eq.s32.totalorder %s24, 1
      %p157 = por %p155, %p156
      %p158 = scmp.ne.s32.totalorder %s149, %s150
      %p159 = scmp.eq.s32.totalorder %s24, 0
      %p160 = por %p158, %p159
      %p161 = scmp.ne.s32.totalorder %s149, %s150
      %p162 = scmp.eq.s32.totalorder %s25, 1
      %p163 = por %p161, %p162
      %p165 = scmp.ne.s32.totalorder %s150, %s164
      %p166 = scmp.eq.s32.totalorder %s25, 0
      %p167 = por %p165, %p166
      %s169 = sadd.s32 %s168, 1
      %p172 = scmp.eq.s32.totalorder %s19, 1
      %p173 = scmp.ne.s32.totalorder %s168, %s170
      %p174 = scmp.eq.s32.totalorder %s19, 0
      %p175 = por %p173, %p174
      %p176 = scmp.ne.s32.totalorder %s168, %s170
      %p177 = scmp.eq.s32.totalorder %s24, 1
      %p178 = por %p176, %p177
      %p179 = scmp.ne.s32.totalorder %s170, %s171
      %p180 = scmp.eq.s32.totalorder %s24, 0
      %p181 = por %p179, %p180
      %p182 = scmp.ne.s32.totalorder %s170, %s171
      %p183 = scmp.eq.s32.totalorder %s25, 1
      %p184 = por %p182, %p183
      %p186 = scmp.ne.s32.totalorder %s171, %s185
      %p187 = scmp.eq.s32.totalorder %s25, 0
      %p188 = por %p186, %p187
      %s189 = ssub.s32 %s19, %s26
      %p190 = scmp.eq.s32.totalorder %s189, 0
      %s192 = sadd.s32 %s191, 1
      %s193 = scalar_select %p190, %s191, %s192
      %p196 = pneg %p190
      %p197 = scmp.eq.s32.totalorder %s19, 1
      %p198 = por %p196, %p197
      %p199 = scmp.ne.s32.totalorder %s191, %s194
      %p200 = scmp.eq.s32.totalorder %s19, 0
      %p201 = por %p199, %p200
      %p202 = scmp.ne.s32.totalorder %s191, %s194
      %p203 = scmp.eq.s32.totalorder %s24, 1
      %p204 = por %p202, %p203
      %p205 = scmp.ne.s32.totalorder %s194, %s195
      %p206 = scmp.eq.s32.totalorder %s24, 0
      %p207 = por %p205, %p206
      %p208 = scmp.ne.s32.totalorder %s194, %s195
      %p209 = scmp.eq.s32.totalorder %s25, 1
      %p210 = por %p208, %p209
      %p212 = scmp.ne.s32.totalorder %s195, %s211
      %p213 = scmp.eq.s32.totalorder %s25, 0
      %p214 = por %p212, %p213
      %s215 = ssub.s32 %s19, %s26
      %p216 = scmp.eq.s32.totalorder %s215, 0
      %s218 = sadd.s32 %s217, 1
      %s219 = scalar_select %p216, %s217, %s218
      %p222 = pneg %p216
      %p223 = scmp.eq.s32.totalorder %s19, 1
      %p224 = por %p222, %p223
      %p225 = scmp.ne.s32.totalorder %s217, %s220
      %p226 = scmp.eq.s32.totalorder %s19, 0
      %p227 = por %p225, %p226
      %p228 = scmp.ne.s32.totalorder %s217, %s220
      %p229 = scmp.eq.s32.totalorder %s24, 1
      %p230 = por %p228, %p229
      %p231 = scmp.ne.s32.totalorder %s220, %s221
      %p232 = scmp.eq.s32.totalorder %s24, 0
      %p233 = por %p231, %p232
      %p234 = scmp.ne.s32.totalorder %s220, %s221
      %p235 = scmp.eq.s32.totalorder %s25, 1
      %p236 = por %p234, %p235
      %p238 = scmp.ne.s32.totalorder %s221, %s237
      %p239 = scmp.eq.s32.totalorder %s25, 0
      %p240 = por %p238, %p239
      %p241 = scmp.le.s32.totalorder 1, %s19
      %p242 = scmp.lt.s32.totalorder %s19, 3
      %p243 = pnand %p241, %p242
      %p244 = pneg %p243
      // Predicated region
      $region9: #{tpu_custom_call.1} parent=5 // pred_check
        _
      $region10: #{tpu_custom_call.1} parent=5 // pred_check_branch
        %246 = sbr.rel (%p243) target = $region12
      $region11: #{tpu_custom_call.1} parent=5 // pred_region
        %s247 = ssub.s32 %s19, 1
        // Predicated region
        $region13: #{tpu_custom_call.1} parent=11 // pred_check
          %p248 = pneg %p118
        $region14: #{tpu_custom_call.1} parent=11 // pred_check_branch
          %250 = sbr.rel (%p248) target = $region16
        $region15: #{tpu_custom_call.1} parent=11 // pred_region
          %252 = vsyncadd [#allocation5], 0
          %s253 = sshll.u32 %s3, 4
          %s254 = int_to_ptr.hbm [resolvable:$true] %s253
          %s255 = sshll.u32 [#allocation4], 4
          %s256 = int_to_ptr.vmem [resolvable:$true] %s255
          %261 = dma.hbm_to_vmem [thread:$0]  %s254, 4096, %s256, [#allocation5], 64, 64, 4
        $region16: #{tpu_custom_call.1} parent=11 // pred_fallthru
          _
        // Predicated region
        $region17: #{tpu_custom_call.1} parent=11 // pred_check
          %p262 = pneg %p139
        $region18: #{tpu_custom_call.1} parent=11 // pred_check_branch
          %264 = sbr.rel (%p262) target = $region20
        $region19: #{tpu_custom_call.1} parent=11 // pred_region
          _
        $region20: #{tpu_custom_call.1} parent=11 // pred_fallthru
          _
        // Predicated region
        $region21: #{tpu_custom_call.1} parent=11 // pred_check
          %p265 = pneg %p160
        $region22: #{tpu_custom_call.1} parent=11 // pred_check_branch
          %267 = sbr.rel (%p265) target = $region24
        $region23: #{tpu_custom_call.1} parent=11 // pred_region
          _
        $region24: #{tpu_custom_call.1} parent=11 // pred_fallthru
          _
        // Predicated region
        $region25: #{tpu_custom_call.1} parent=11 // pred_check
          %p268 = pneg %p181
        $region26: #{tpu_custom_call.1} parent=11 // pred_check_branch
          %270 = sbr.rel (%p268) target = $region28
        $region27: #{tpu_custom_call.1} parent=11 // pred_region
          _
        $region28: #{tpu_custom_call.1} parent=11 // pred_fallthru
          _
      $region12: #{tpu_custom_call.1} parent=5 // pred_fallthru
        _
      %p271 = scmp.lt.s32.totalorder %s19, 2
      // Predicated region
      $region29: #{tpu_custom_call.1} parent=5 // pred_check
        %p272 = pneg %p271
      $region30: #{tpu_custom_call.1} parent=5 // pred_check_branch
        %274 = sbr.rel (%p272) target = $region32
      $region31: #{tpu_custom_call.1} parent=5 // pred_region
        // Predicated region
        $region33: #{tpu_custom_call.1} parent=31 // pred_check
          %p275 = pneg %p39
        $region34: #{tpu_custom_call.1} parent=31 // pred_check_branch
          %277 = sbr.rel (%p275) target = $region36
        $region35: #{tpu_custom_call.1} parent=31 // pred_region
          %s278 = sand.u32 %s29, 1
          %s279 = scalar_lea.sflag [#allocation3], %s278
          %s280 = sand.u32 %s29, 1
          %s281 = smul.addr %s280, 144
          %s282 = scalar_lea.vmem [#allocation2], %s281
          %284 = vsyncadd %s279, 0
          %s285 = smul.addr %s19, 36
          %s286 = smul.addr %s285, 4
          %s287 = scalar_lea.hbm %s0, %s286
          %s288 = sshll.u32 %s287, 4
          %s289 = int_to_ptr.hbm [resolvable:$true] %s288
          %s290 = sshll.u32 %s282, 4
          %s291 = int_to_ptr.vmem [resolvable:$true] %s290
          %296 = dma.hbm_to_vmem [thread:$0]  %s289, 2304, %s291, %s279, 256, 256, 16
        $region36: #{tpu_custom_call.1} parent=31 // pred_fallthru
          _
        // Predicated region
        $region37: #{tpu_custom_call.1} parent=31 // pred_check
          %p297 = pneg %p65
        $region38: #{tpu_custom_call.1} parent=31 // pred_check_branch
          %299 = sbr.rel (%p297) target = $region40
        $region39: #{tpu_custom_call.1} parent=31 // pred_region
          %p300 = scmp.lt.s32.totalorder %s19, 1
          %s301 = scalar_select %p300, %s19, 1
          %s302 = smul.addr %s301, 5
          %s303 = smul.addr %s302, 8
          %s304 = scalar_lea.vmem %s1, %s303
        $region40: #{tpu_custom_call.1} parent=31 // pred_fallthru
          _
        // Predicated region
        $region41: #{tpu_custom_call.1} parent=31 // pred_check
          %p305 = pneg %p91
        $region42: #{tpu_custom_call.1} parent=31 // pred_check_branch
          %307 = sbr.rel (%p305) target = $region44
        $region43: #{tpu_custom_call.1} parent=31 // pred_region
          %p308 = scmp.lt.s32.totalorder %s19, 1
          %s309 = scalar_select %p308, %s19, 1
          %s310 = smul.addr %s309, 5
          %s311 = smul.addr %s310, 4
          %s312 = scalar_lea.vmem %s2, %s311
        $region44: #{tpu_custom_call.1} parent=31 // pred_fallthru
          _
      $region32: #{tpu_custom_call.1} parent=5 // pred_fallthru
        _
      %p313 = scmp.le.s32.totalorder 1, %s19
      %p314 = scmp.lt.s32.totalorder %s19, 3
      %p315 = pnand %p313, %p314
      %p316 = pneg %p315
      // Predicated region
      $region45: #{tpu_custom_call.1} parent=5 // pred_check
        _
      $region46: #{tpu_custom_call.1} parent=5 // pred_check_branch
        %318 = sbr.rel (%p315) target = $region48
      $region47: #{tpu_custom_call.1} parent=5 // pred_region
        %s319 = ssub.s32 %s19, 1
        %s320 = sand.u32 %s32, 1
        %s321 = scalar_lea.sflag [#allocation3], %s320
        %s322 = sand.u32 %s32, 1
        %s323 = smul.addr %s322, 144
        %s324 = scalar_lea.vmem [#allocation2], %s323
        // Predicated region
        $region49: #{tpu_custom_call.1} parent=47 // pred_check
          %p325 = pneg %p45
        $region50: #{tpu_custom_call.1} parent=47 // pred_check_branch
          %327 = sbr.rel (%p325) target = $region52
        $region51: #{tpu_custom_call.1} parent=47 // pred_region
          %329 = dma.done %s321, 2304
        $region52: #{tpu_custom_call.1} parent=47 // pred_fallthru
          _
        // Predicated region
        $region53: #{tpu_custom_call.1} parent=47 // pred_check
          %p330 = pneg %p118
        $region54: #{tpu_custom_call.1} parent=47 // pred_check_branch
          %332 = sbr.rel (%p330) target = $region56
        $region55: #{tpu_custom_call.1} parent=47 // pred_region
          %334 = dma.done [#allocation5], 4096
        $region56: #{tpu_custom_call.1} parent=47 // pred_fallthru
          _
        %s335 = sand.u32 %s32, 1
        %s336 = scalar_lea.sflag [#allocation3], %s335
        %s337 = sand.u32 %s32, 1
        %s338 = smul.addr %s337, 144
        %s339 = scalar_lea.vmem [#allocation2], %s338
        %p340 = pneg %p45
        %p341 = pneg %p42
        %p342 = scmp.lt.s32.totalorder %s24, 1
        %s343 = scalar_select %p342, %s24, 1
        %s344 = smul.addr %s343, 5
        %s345 = smul.addr %s344, 8
        %s346 = scalar_lea.vmem %s1, %s345
        %p347 = pneg %p71
        %p348 = pneg %p68
        %p349 = scmp.lt.s32.totalorder %s24, 1
        %s350 = scalar_select %p349, %s24, 1
        %s351 = smul.addr %s350, 5
        %s352 = smul.addr %s351, 4
        %s353 = scalar_lea.vmem %s2, %s352
        %p354 = pneg %p97
        %p355 = pneg %p94
        %p356 = pneg %p118
        %p357 = pneg %p115
        %p358 = pneg %p139
        %p359 = pneg %p136
        %p360 = pneg %p160
        %p361 = pneg %p157
        %p362 = pneg %p181
        %p363 = pneg %p178
        %p364 = pneg %p207
        %p365 = pneg %p204
        %p366 = scmp.lt.s32.totalorder %s24, 1
        %s367 = scalar_select %p366, %s24, 1
        %s368 = smul.addr %s367, 20
        %s369 = smul.addr %s368, 8
        %s370 = scalar_lea.vmem %s7, %s369
        %p371 = pneg %p233
        %p372 = pneg %p230
        %p373 = scmp.lt.s32.totalorder %s24, 1
        %s374 = scalar_select %p373, %s24, 1
        %s375 = smul.addr %s374, 5
        %s376 = smul.addr %s375, 4
        %s377 = scalar_lea.vmem %s8, %s376
        %p378 = scmp.lt.s32.totalorder %s24, 1
        %s379 = scalar_select %p378, %s24, 1
        %s380 = smul.addr %s379, 5
        %s381 = smul.addr %s380, 8
        %s382 = scalar_lea.vmem %s1, %s381
        %p383 = scmp.lt.s32.totalorder %s24, 1
        %s384 = scalar_select %p383, %s24, 1
        %s385 = smul.addr %s384, 5
        %s386 = smul.addr %s385, 4
        %s387 = scalar_lea.vmem %s2, %s386
        %p388 = scmp.lt.s32.totalorder %s24, 1
        %s389 = scalar_select %p388, %s24, 1
        %s390 = smul.addr %s389, 20
        %s391 = smul.addr %s390, 8
        %s392 = scalar_lea.vmem %s7, %s391
        %p393 = scmp.lt.s32.totalorder %s24, 1
        %s394 = scalar_select %p393, %s24, 1
        %s395 = smul.addr %s394, 5
        %s396 = smul.addr %s395, 4
        %s397 = scalar_lea.vmem %s8, %s396
        %v399 = vld [vmem:[%s324] sm:$0xff]
        %v400 = vld [vmem:[%s324 + $0x8] sm:$0xff]
        %v401 = vld [vmem:[%s324 + $0x10] sm:$0xff]
        %v402 = vld [vmem:[%s324 + $0x18] sm:$0xff]
        %v403 = vld [vmem:[%s324 + $0x20] sm:$0xff]
        %v404 = vld [vmem:[%s324 + $0x28] sm:$0xff]
        %v405 = vld [vmem:[%s324 + $0x30] sm:$0xff]
        %v406 = vld [vmem:[%s324 + $0x38] sm:$0xff]
        %v407 = vld [vmem:[%s324 + $0x40] sm:$0xff]
        %v408 = vld [vmem:[%s324 + $0x48] sm:$0xff]
        %v409 = vld [vmem:[%s324 + $0x50] sm:$0xff]
        %v410 = vld [vmem:[%s324 + $0x58] sm:$0xff]
        %v411 = vld [vmem:[%s324 + $0x60] sm:$0xff]
        %v412 = vld [vmem:[%s324 + $0x68] sm:$0xff]
        %v413 = vld [vmem:[%s324 + $0x70] sm:$0xff]
        %v414 = vld [vmem:[%s324 + $0x78] sm:$0xff]
        %v415 = vld [vmem:[%s324 + $0x80] sm:$0xff]
        %v416 = vld [vmem:[%s324 + $0x88] sm:$0xff]
        %v417 = vld [vmem:[%s382] sm:$0xff]
        %v418 = vld [vmem:[%s382 + $0x8] sm:$0xff]
        %v419 = vld [vmem:[%s382 + $0x10] sm:$0xff]
        %v420 = vld [vmem:[%s382 + $0x18] sm:$0xff]
        %v421 = vld [vmem:[%s382 + $0x20] sm:$0xf]
        %v422 = vld [vmem:[%s387] sm:$0xf]
        %v423 = vld [vmem:[%s387 + $0x4] sm:$0xf]
        %v424 = vld [vmem:[%s387 + $0x8] sm:$0xf]
        %v425 = vld [vmem:[%s387 + $0xc] sm:$0xf]
        %v426 = vld [vmem:[%s387 + $0x10] sm:$0x3]
        %v427 = vunpack.c.l.bf16 %v422
        %v428 = vunpack.c.l.bf16 %v423
        %v429 = vunpack.c.l.bf16 %v424
        %v430 = vunpack.c.l.bf16 %v425
        %v431 = vunpack.c.l.bf16 %v426
        %vm432 = vcmp.gt.f32.partialorder %v427, 0.5
        %vm433 = vcmp.gt.f32.partialorder %v428, 0.5
        %vm434 = vcmp.gt.f32.partialorder %v429, 0.5
        %vm435 = vcmp.gt.f32.partialorder %v430, 0.5
        %vm436 = vcmp.gt.f32.partialorder %v431, 0.5
        %v437 = vld [vmem:[#allocation4] sm:$0xf]
        %v438 = vld [vmem:[#allocation4 + $0x4] sm:$0xf]
        %v439 = vld [vmem:[#allocation4 + $0x8] sm:$0xf]
        %v440 = vld [vmem:[#allocation4 + $0xc] sm:$0xf]
        %v441 = vld [vmem:[#allocation4 + $0x10] sm:$0xf]
        %v442 = vld [vmem:[#allocation4 + $0x14] sm:$0xf]
        %v443 = vld [vmem:[#allocation4 + $0x18] sm:$0xf]
        %v444 = vld [vmem:[#allocation4 + $0x1c] sm:$0xf]
        %v445 = vld [vmem:[#allocation4 + $0x20] sm:$0xf]
        %v446 = vld [vmem:[#allocation4 + $0x24] sm:$0xf]
        %v447 = vld [vmem:[#allocation4 + $0x28] sm:$0xf]
        %v448 = vld [vmem:[#allocation4 + $0x2c] sm:$0xf]
        %v449 = vld [vmem:[#allocation4 + $0x30] sm:$0xf]
        %v450 = vld [vmem:[#allocation4 + $0x34] sm:$0xf]
        %v451 = vld [vmem:[#allocation4 + $0x38] sm:$0xf]
        %v452 = vld [vmem:[#allocation4 + $0x3c] sm:$0xf]
        %v453 = vld [vmem:[#allocation4 + $0x40] sm:$0xf]
        %v454 = vld [vmem:[#allocation4 + $0x44] sm:$0xf]
        %v455 = vld [vmem:[#allocation4 + $0x48] sm:$0xf]
        %v456 = vld [vmem:[#allocation4 + $0x4c] sm:$0xf]
        %v457 = vld [vmem:[#allocation4 + $0x50] sm:$0xf]
        %v458 = vld [vmem:[#allocation4 + $0x54] sm:$0xf]
        %v459 = vld [vmem:[#allocation4 + $0x58] sm:$0xf]
        %v460 = vld [vmem:[#allocation4 + $0x5c] sm:$0xf]
        %v461 = vld [vmem:[#allocation4 + $0x60] sm:$0xf]
        %v462 = vld [vmem:[#allocation4 + $0x64] sm:$0xf]
        %v463 = vld [vmem:[#allocation4 + $0x68] sm:$0xf]
        %v464 = vld [vmem:[#allocation4 + $0x6c] sm:$0xf]
        %v465 = vld [vmem:[#allocation4 + $0x70] sm:$0xf]
        %v466 = vld [vmem:[#allocation4 + $0x74] sm:$0xf]
        %v467 = vld [vmem:[#allocation4 + $0x78] sm:$0xf]
        %v468 = vld [vmem:[#allocation4 + $0x7c] sm:$0xf]
        %v469 = vld [vmem:[#allocation4 + $0x80] sm:$0xf]
        %v470 = vld [vmem:[#allocation4 + $0x84] sm:$0xf]
        %v471 = vld [vmem:[#allocation4 + $0x88] sm:$0xf]
        %v472 = vld [vmem:[#allocation4 + $0x8c] sm:$0xf]
        %v473 = vld [vmem:[#allocation4 + $0x90] sm:$0xf]
        %v474 = vld [vmem:[#allocation4 + $0x94] sm:$0xf]
        %v475 = vld [vmem:[#allocation4 + $0x98] sm:$0xf]
        %v476 = vld [vmem:[#allocation4 + $0x9c] sm:$0xf]
        %v477 = vld [vmem:[#allocation4 + $0xa0] sm:$0xf]
        %v478 = vld [vmem:[#allocation4 + $0xa4] sm:$0xf]
        %v479 = vld [vmem:[#allocation4 + $0xa8] sm:$0xf]
        %v480 = vld [vmem:[#allocation4 + $0xac] sm:$0xf]
        %v481 = vld [vmem:[#allocation4 + $0xb0] sm:$0xf]
        %v482 = vld [vmem:[#allocation4 + $0xb4] sm:$0xf]
        %v483 = vld [vmem:[#allocation4 + $0xb8] sm:$0xf]
        %v484 = vld [vmem:[#allocation4 + $0xbc] sm:$0xf]
        %v485 = vld [vmem:[#allocation4 + $0xc0] sm:$0xf]
        %v486 = vld [vmem:[#allocation4 + $0xc4] sm:$0xf]
        %v487 = vld [vmem:[#allocation4 + $0xc8] sm:$0xf]
        %v488 = vld [vmem:[#allocation4 + $0xcc] sm:$0xf]
        %v489 = vld [vmem:[#allocation4 + $0xd0] sm:$0xf]
        %v490 = vld [vmem:[#allocation4 + $0xd4] sm:$0xf]
        %v491 = vld [vmem:[#allocation4 + $0xd8] sm:$0xf]
        %v492 = vld [vmem:[#allocation4 + $0xdc] sm:$0xf]
        %v493 = vld [vmem:[#allocation4 + $0xe0] sm:$0xf]
        %v494 = vld [vmem:[#allocation4 + $0xe4] sm:$0xf]
        %v495 = vld [vmem:[#allocation4 + $0xe8] sm:$0xf]
        %v496 = vld [vmem:[#allocation4 + $0xec] sm:$0xf]
        %v497 = vld [vmem:[#allocation4 + $0xf0] sm:$0xf]
        %v498 = vld [vmem:[#allocation4 + $0xf4] sm:$0xf]
        %v499 = vld [vmem:[#allocation4 + $0xf8] sm:$0xf]
        %v500 = vld [vmem:[#allocation4 + $0xfc] sm:$0xf]
        %v501 = vld [vmem:[%s4] sm:$0x1]
        %v503 = vperm.slane %v501, 0
        %v523 = vunpack.c.l.b16 %v399
        %v524 = vunpack.c.h.b16 %v399
        %v525 = vunpack.c.l.b16 %v400
        %v526 = vunpack.c.h.b16 %v400
        %v527 = vunpack.c.l.b16 %v401
        %v528 = vunpack.c.h.b16 %v401
        %v529 = vunpack.c.l.b16 %v402
        %v530 = vunpack.c.h.b16 %v402
        %v531 = vunpack.c.l.b16 %v403
        %v532 = vunpack.c.h.b16 %v403
        %v533 = vunpack.c.l.b16 %v404
        %v534 = vunpack.c.h.b16 %v404
        %v535 = vunpack.c.l.b16 %v405
        %v536 = vunpack.c.h.b16 %v405
        %v537 = vunpack.c.l.b16 %v406
        %v538 = vunpack.c.h.b16 %v406
        %v539 = vunpack.c.l.b16 %v407
        %v540 = vunpack.c.h.b16 %v407
        %v541 = vunpack.c.l.b16 %v408
        %v542 = vunpack.c.h.b16 %v408
        %v543 = vunpack.c.l.b16 %v409
        %v544 = vunpack.c.h.b16 %v409
        %v545 = vunpack.c.l.b16 %v410
        %v546 = vunpack.c.h.b16 %v410
        %v547 = vunpack.c.l.b16 %v411
        %v548 = vunpack.c.h.b16 %v411
        %v549 = vunpack.c.l.b16 %v412
        %v550 = vunpack.c.h.b16 %v412
        %v551 = vunpack.c.l.b16 %v413
        %v552 = vunpack.c.h.b16 %v413
        %v553 = vunpack.c.l.b16 %v414
        %v554 = vunpack.c.h.b16 %v414
        %v555 = vunpack.c.l.b16 %v415
        %v556 = vunpack.c.h.b16 %v415
        %v557 = vunpack.c.l.b16 %v416
        %v558 = vunpack.c.h.b16 %v416
        %v559 = vpack.c.b16 %v527, %v523
        %v560 = vpack.c.b16 %v528, %v524
        %v561 = vpack.c.b16 %v529, %v525
        %v562 = vpack.c.b16 %v530, %v526
        %v563 = vpack.c.b16 %v535, %v531
        %v564 = vpack.c.b16 %v536, %v532
        %v565 = vpack.c.b16 %v537, %v533
        %v566 = vpack.c.b16 %v538, %v534
        %v567 = vpack.c.b16 %v543, %v539
        %v568 = vpack.c.b16 %v544, %v540
        %v569 = vpack.c.b16 %v545, %v541
        %v570 = vpack.c.b16 %v546, %v542
        %v571 = vpack.c.b16 %v551, %v547
        %v572 = vpack.c.b16 %v552, %v548
        %v573 = vpack.c.b16 %v553, %v549
        %v574 = vpack.c.b16 %v554, %v550
        %v575 = vpack.c.b16 %v555, %v555
        %v576 = vpack.c.b16 %v556, %v556
        %v577 = vpack.c.b16 %v557, %v557
        %v578 = vpack.c.b16 %v558, %v558
        %v663 = vunpack.c.l.b16 %v437
        %v664 = vunpack.c.l.b16 %v438
        %v665 = vunpack.c.l.b16 %v439
        %v666 = vunpack.c.l.b16 %v440
        %v667 = vunpack.c.l.b16 %v441
        %v668 = vunpack.c.l.b16 %v442
        %v669 = vunpack.c.l.b16 %v443
        %v670 = vunpack.c.l.b16 %v444
        %v671 = vunpack.c.l.b16 %v445
        %v672 = vunpack.c.l.b16 %v446
        %v673 = vunpack.c.l.b16 %v447
        %v674 = vunpack.c.l.b16 %v448
        %v675 = vunpack.c.l.b16 %v449
        %v676 = vunpack.c.l.b16 %v450
        %v677 = vunpack.c.l.b16 %v451
        %v678 = vunpack.c.l.b16 %v452
        %v679 = vunpack.c.l.b16 %v453
        %v680 = vunpack.c.l.b16 %v454
        %v681 = vunpack.c.l.b16 %v455
        %v682 = vunpack.c.l.b16 %v456
        %v683 = vunpack.c.l.b16 %v457
        %v684 = vunpack.c.l.b16 %v458
        %v685 = vunpack.c.l.b16 %v459
        %v686 = vunpack.c.l.b16 %v460
        %v687 = vunpack.c.l.b16 %v461
        %v688 = vunpack.c.l.b16 %v462
        %v689 = vunpack.c.l.b16 %v463
        %v690 = vunpack.c.l.b16 %v464
        %v691 = vunpack.c.l.b16 %v465
        %v692 = vunpack.c.l.b16 %v466
        %v693 = vunpack.c.l.b16 %v467
        %v694 = vunpack.c.l.b16 %v468
        %v695 = vunpack.c.l.b16 %v469
        %v696 = vunpack.c.l.b16 %v470
        %v697 = vunpack.c.l.b16 %v471
        %v698 = vunpack.c.l.b16 %v472
        %v699 = vunpack.c.l.b16 %v473
        %v700 = vunpack.c.l.b16 %v474
        %v701 = vunpack.c.l.b16 %v475
        %v702 = vunpack.c.l.b16 %v476
        %v703 = vunpack.c.l.b16 %v477
        %v704 = vunpack.c.l.b16 %v478
        %v705 = vunpack.c.l.b16 %v479
        %v706 = vunpack.c.l.b16 %v480
        %v707 = vunpack.c.l.b16 %v481
        %v708 = vunpack.c.l.b16 %v482
        %v709 = vunpack.c.l.b16 %v483
        %v710 = vunpack.c.l.b16 %v484
        %v711 = vunpack.c.l.b16 %v485
        %v712 = vunpack.c.l.b16 %v486
        %v713 = vunpack.c.l.b16 %v487
        %v714 = vunpack.c.l.b16 %v488
        %v715 = vunpack.c.l.b16 %v489
        %v716 = vunpack.c.l.b16 %v490
        %v717 = vunpack.c.l.b16 %v491
        %v718 = vunpack.c.l.b16 %v492
        %v719 = vunpack.c.l.b16 %v493
        %v720 = vunpack.c.l.b16 %v494
        %v721 = vunpack.c.l.b16 %v495
        %v722 = vunpack.c.l.b16 %v496
        %v723 = vunpack.c.l.b16 %v497
        %v724 = vunpack.c.l.b16 %v498
        %v725 = vunpack.c.l.b16 %v499
        %v726 = vunpack.c.l.b16 %v500
        %v727 = vpack.c.b16 %v664, %v663
        %v728 = vpack.c.b16 %v666, %v665
        %v729 = vpack.c.b16 %v668, %v667
        %v730 = vpack.c.b16 %v670, %v669
        %v731 = vpack.c.b16 %v672, %v671
        %v732 = vpack.c.b16 %v674, %v673
        %v733 = vpack.c.b16 %v676, %v675
        %v734 = vpack.c.b16 %v678, %v677
        %v735 = vpack.c.b16 %v680, %v679
        %v736 = vpack.c.b16 %v682, %v681
        %v737 = vpack.c.b16 %v684, %v683
        %v738 = vpack.c.b16 %v686, %v685
        %v739 = vpack.c.b16 %v688, %v687
        %v740 = vpack.c.b16 %v690, %v689
        %v741 = vpack.c.b16 %v692, %v691
        %v742 = vpack.c.b16 %v694, %v693
        %v743 = vpack.c.b16 %v696, %v695
        %v744 = vpack.c.b16 %v698, %v697
        %v745 = vpack.c.b16 %v700, %v699
        %v746 = vpack.c.b16 %v702, %v701
        %v747 = vpack.c.b16 %v704, %v703
        %v748 = vpack.c.b16 %v706, %v705
        %v749 = vpack.c.b16 %v708, %v707
        %v750 = vpack.c.b16 %v710, %v709
        %v751 = vpack.c.b16 %v712, %v711
        %v752 = vpack.c.b16 %v714, %v713
        %v753 = vpack.c.b16 %v716, %v715
        %v754 = vpack.c.b16 %v718, %v717
        %v755 = vpack.c.b16 %v720, %v719
        %v756 = vpack.c.b16 %v722, %v721
        %v757 = vpack.c.b16 %v724, %v723
        %v758 = vpack.c.b16 %v726, %v725
        %791 = vmatpush.bf16.msra.mxu0 %v734
        %792 = vmatpush.bf16.msra.mxu0 %v733
        %793 = vmatpush.bf16.msra.mxu0 %v732
        %794 = vmatpush.bf16.msra.mxu0 %v731
        %795 = vmatpush.bf16.msra.mxu0 %v730
        %796 = vmatpush.bf16.msra.mxu0 %v729
        %797 = vmatpush.bf16.msra.mxu0 %v728
        %798 = vmatpush.bf16.msra.mxu0 %v727
        %799 = vmatmul.bf16.gmra.mxu0 %v559
        %v800 = vpop.f32.mrf.mxu0
        %v801 = vadd.f32 %v503, %v800
        %v802 = vpop.f32.mrf.mxu0
        %v803 = vadd.f32 %v503, %v802
        %804 = vmatmul.bf16.gmra.mxu0 %v563
        %v805 = vpop.f32.mrf.mxu0
        %v806 = vadd.f32 %v503, %v805
        %v807 = vpop.f32.mrf.mxu0
        %v808 = vadd.f32 %v503, %v807
        %809 = vmatmul.bf16.gmra.mxu0 %v567
        %v810 = vpop.f32.mrf.mxu0
        %v811 = vadd.f32 %v503, %v810
        %v812 = vpop.f32.mrf.mxu0
        %v813 = vadd.f32 %v503, %v812
        %814 = vmatmul.bf16.gmra.mxu0 %v571
        %v815 = vpop.f32.mrf.mxu0
        %v816 = vadd.f32 %v503, %v815
        %v817 = vpop.f32.mrf.mxu0
        %v818 = vadd.f32 %v503, %v817
        %819 = vmatmul.bf16.gmra.mxu0 %v575
        %v820 = vpop.f32.mrf.mxu0
        %v821 = vadd.f32 %v503, %v820
        %v822 = vpop.f32.mrf.mxu0
        %823 = vdwg.mxu0
        %824 = vmatpush.bf16.msra.mxu0 %v742
        %825 = vmatpush.bf16.msra.mxu0 %v741
        %826 = vmatpush.bf16.msra.mxu0 %v740
        %827 = vmatpush.bf16.msra.mxu0 %v739
        %828 = vmatpush.bf16.msra.mxu0 %v738
        %829 = vmatpush.bf16.msra.mxu0 %v737
        %830 = vmatpush.bf16.msra.mxu0 %v736
        %831 = vmatpush.bf16.msra.mxu0 %v735
        %832 = vmatmul.bf16.gmra.mxu0 %v560
        %v833 = vpop.f32.mrf.mxu0
        %v834 = vadd.f32 %v801, %v833
        %v835 = vpop.f32.mrf.mxu0
        %v836 = vadd.f32 %v803, %v835
        %837 = vmatmul.bf16.gmra.mxu0 %v564
        %v838 = vpop.f32.mrf.mxu0
        %v839 = vadd.f32 %v806, %v838
        %v840 = vpop.f32.mrf.mxu0
        %v841 = vadd.f32 %v808, %v840
        %842 = vmatmul.bf16.gmra.mxu0 %v568
        %v843 = vpop.f32.mrf.mxu0
        %v844 = vadd.f32 %v811, %v843
        %v845 = vpop.f32.mrf.mxu0
        %v846 = vadd.f32 %v813, %v845
        %847 = vmatmul.bf16.gmra.mxu0 %v572
        %v848 = vpop.f32.mrf.mxu0
        %v849 = vadd.f32 %v816, %v848
        %v850 = vpop.f32.mrf.mxu0
        %v851 = vadd.f32 %v818, %v850
        %852 = vmatmul.bf16.gmra.mxu0 %v576
        %v853 = vpop.f32.mrf.mxu0
        %v854 = vadd.f32 %v821, %v853
        %v855 = vpop.f32.mrf.mxu0
        %856 = vdwg.mxu0
        %857 = vmatpush.bf16.msra.mxu0 %v750
        %858 = vmatpush.bf16.msra.mxu0 %v749
        %859 = vmatpush.bf16.msra.mxu0 %v748
        %860 = vmatpush.bf16.msra.mxu0 %v747
        %861 = vmatpush.bf16.msra.mxu0 %v746
        %862 = vmatpush.bf16.msra.mxu0 %v745
        %863 = vmatpush.bf16.msra.mxu0 %v744
        %864 = vmatpush.bf16.msra.mxu0 %v743
        %865 = vmatmul.bf16.gmra.mxu0 %v561
        %v866 = vpop.f32.mrf.mxu0
        %v867 = vadd.f32 %v834, %v866
        %v868 = vpop.f32.mrf.mxu0
        %v869 = vadd.f32 %v836, %v868
        %870 = vmatmul.bf16.gmra.mxu0 %v565
        %v871 = vpop.f32.mrf.mxu0
        %v872 = vadd.f32 %v839, %v871
        %v873 = vpop.f32.mrf.mxu0
        %v874 = vadd.f32 %v841, %v873
        %875 = vmatmul.bf16.gmra.mxu0 %v569
        %v876 = vpop.f32.mrf.mxu0
        %v877 = vadd.f32 %v844, %v876
        %v878 = vpop.f32.mrf.mxu0
        %v879 = vadd.f32 %v846, %v878
        %880 = vmatmul.bf16.gmra.mxu0 %v573
        %v881 = vpop.f32.mrf.mxu0
        %v882 = vadd.f32 %v849, %v881
        %v883 = vpop.f32.mrf.mxu0
        %v884 = vadd.f32 %v851, %v883
        %885 = vmatmul.bf16.gmra.mxu0 %v577
        %v886 = vpop.f32.mrf.mxu0
        %v887 = vadd.f32 %v854, %v886
        %v888 = vpop.f32.mrf.mxu0
        %889 = vdwg.mxu0
        %890 = vmatpush.bf16.msra.mxu0 %v758
        %891 = vmatpush.bf16.msra.mxu0 %v757
        %892 = vmatpush.bf16.msra.mxu0 %v756
        %893 = vmatpush.bf16.msra.mxu0 %v755
        %894 = vmatpush.bf16.msra.mxu0 %v754
        %895 = vmatpush.bf16.msra.mxu0 %v753
        %896 = vmatpush.bf16.msra.mxu0 %v752
        %897 = vmatpush.bf16.msra.mxu0 %v751
        %898 = vmatmul.bf16.gmra.mxu0 %v562
        %v899 = vpop.f32.mrf.mxu0
        %v900 = vadd.f32 %v867, %v899
        %v901 = vpop.f32.mrf.mxu0
        %v902 = vadd.f32 %v869, %v901
        %903 = vmatmul.bf16.gmra.mxu0 %v566
        %v904 = vpop.f32.mrf.mxu0
        %v905 = vadd.f32 %v872, %v904
        %v906 = vpop.f32.mrf.mxu0
        %v907 = vadd.f32 %v874, %v906
        %908 = vmatmul.bf16.gmra.mxu0 %v570
        %v909 = vpop.f32.mrf.mxu0
        %v910 = vadd.f32 %v877, %v909
        %v911 = vpop.f32.mrf.mxu0
        %v912 = vadd.f32 %v879, %v911
        %913 = vmatmul.bf16.gmra.mxu0 %v574
        %v914 = vpop.f32.mrf.mxu0
        %v915 = vadd.f32 %v882, %v914
        %v916 = vpop.f32.mrf.mxu0
        %v917 = vadd.f32 %v884, %v916
        %918 = vmatmul.bf16.gmra.mxu0 %v578
        %v919 = vpop.f32.mrf.mxu0
        %v920 = vadd.f32 %v887, %v919
        %v921 = vpop.f32.mrf.mxu0
        %922 = vdwg.mxu0
        %v923 = vmax.f32 %v900, 0.0
        %v924 = vmax.f32 %v902, 0.0
        %v925 = vmax.f32 %v905, 0.0
        %v926 = vmax.f32 %v907, 0.0
        %v927 = vmax.f32 %v910, 0.0
        %v928 = vmax.f32 %v912, 0.0
        %v929 = vmax.f32 %v915, 0.0
        %v930 = vmax.f32 %v917, 0.0
        %v931 = vmax.f32 %v920, 0.0
        %v932 = vpack.c.bf16 %v924, %v923
        %v933 = vpack.c.bf16 %v926, %v925
        %v934 = vpack.c.bf16 %v928, %v927
        %v935 = vpack.c.bf16 %v930, %v929
        %v936 = vpack.c.bf16 %v931, %v931
        %v937 = vld [vmem:[%s5] sm:$0xf]
        %v938 = vld [vmem:[%s5 + $0x4] sm:$0xf]
        %v939 = vld [vmem:[%s5 + $0x8] sm:$0xf]
        %v940 = vld [vmem:[%s5 + $0xc] sm:$0xf]
        %v941 = vld [vmem:[%s5 + $0x10] sm:$0xf]
        %v942 = vld [vmem:[%s5 + $0x14] sm:$0xf]
        %v943 = vld [vmem:[%s5 + $0x18] sm:$0xf]
        %v944 = vld [vmem:[%s5 + $0x1c] sm:$0xf]
        %v945 = vld [vmem:[%s5 + $0x20] sm:$0xf]
        %v946 = vld [vmem:[%s5 + $0x24] sm:$0xf]
        %v947 = vld [vmem:[%s5 + $0x28] sm:$0xf]
        %v948 = vld [vmem:[%s5 + $0x2c] sm:$0xf]
        %v949 = vld [vmem:[%s5 + $0x30] sm:$0xf]
        %v950 = vld [vmem:[%s5 + $0x34] sm:$0xf]
        %v951 = vld [vmem:[%s5 + $0x38] sm:$0xf]
        %v952 = vld [vmem:[%s5 + $0x3c] sm:$0xf]
        %v953 = vld [vmem:[%s6] sm:$0x1]
        %v955 = vperm.slane %v953, 0
        %v973 = vunpack.c.l.b16 %v937
        %v974 = vunpack.c.l.b16 %v938
        %v975 = vunpack.c.l.b16 %v939
        %v976 = vunpack.c.l.b16 %v940
        %v977 = vunpack.c.l.b16 %v941
        %v978 = vunpack.c.l.b16 %v942
        %v979 = vunpack.c.l.b16 %v943
        %v980 = vunpack.c.l.b16 %v944
        %v981 = vunpack.c.l.b16 %v945
        %v982 = vunpack.c.l.b16 %v946
        %v983 = vunpack.c.l.b16 %v947
        %v984 = vunpack.c.l.b16 %v948
        %v985 = vunpack.c.l.b16 %v949
        %v986 = vunpack.c.l.b16 %v950
        %v987 = vunpack.c.l.b16 %v951
        %v988 = vunpack.c.l.b16 %v952
        %v989 = vpack.c.b16 %v974, %v973
        %v990 = vpack.c.b16 %v976, %v975
        %v991 = vpack.c.b16 %v978, %v977
        %v992 = vpack.c.b16 %v980, %v979
        %v993 = vpack.c.b16 %v982, %v981
        %v994 = vpack.c.b16 %v984, %v983
        %v995 = vpack.c.b16 %v986, %v985
        %v996 = vpack.c.b16 %v988, %v987
        %1005 = vmatpush.bf16.msra.mxu0 %v996
        %1006 = vmatpush.bf16.msra.mxu0 %v995
        %1007 = vmatpush.bf16.msra.mxu0 %v994
        %1008 = vmatpush.bf16.msra.mxu0 %v993
        %1009 = vmatpush.bf16.msra.mxu0 %v992
        %1010 = vmatpush.bf16.msra.mxu0 %v991
        %1011 = vmatpush.bf16.msra.mxu0 %v990
        %1012 = vmatpush.bf16.msra.mxu0 %v989
        %1013 = vmatmul.bf16.gmra.mxu0 %v932
        %v1014 = vpop.f32.mrf.mxu0
        %v1015 = vadd.f32 %v955, %v1014
        %v1016 = vpop.f32.mrf.mxu0
        %v1017 = vadd.f32 %v955, %v1016
        %1018 = vmatmul.bf16.gmra.mxu0 %v933
        %v1019 = vpop.f32.mrf.mxu0
        %v1020 = vadd.f32 %v955, %v1019
        %v1021 = vpop.f32.mrf.mxu0
        %v1022 = vadd.f32 %v955, %v1021
        %1023 = vmatmul.bf16.gmra.mxu0 %v934
        %v1024 = vpop.f32.mrf.mxu0
        %v1025 = vadd.f32 %v955, %v1024
        %v1026 = vpop.f32.mrf.mxu0
        %v1027 = vadd.f32 %v955, %v1026
        %1028 = vmatmul.bf16.gmra.mxu0 %v935
        %v1029 = vpop.f32.mrf.mxu0
        %v1030 = vadd.f32 %v955, %v1029
        %v1031 = vpop.f32.mrf.mxu0
        %v1032 = vadd.f32 %v955, %v1031
        %1033 = vmatmul.bf16.gmra.mxu0 %v936
        %v1034 = vpop.f32.mrf.mxu0
        %v1035 = vadd.f32 %v955, %v1034
        %v1036 = vpop.f32.mrf.mxu0
        %1037 = vdwg.mxu0
        %v1038 = vtanh.pop %v1015
        %v1039 = vtanh.pop %v1017
        %v1040 = vtanh.pop %v1020
        %v1041 = vtanh.pop %v1022
        %v1042 = vtanh.pop %v1025
        %v1043 = vtanh.pop %v1027
        %v1044 = vtanh.pop %v1030
        %v1045 = vtanh.pop %v1032
        %v1046 = vtanh.pop %v1035
        %v1047 = vpack.c.bf16 %v1039, %v1038
        %v1048 = vpack.c.bf16 %v1041, %v1040
        %v1049 = vpack.c.bf16 %v1043, %v1042
        %v1050 = vpack.c.bf16 %v1045, %v1044
        %v1051 = vpack.c.bf16 %v1046, %v1046
        %vm1052 = vcmask 588800
        %v1053 = vsel %vm1052, %v417, -inf
        %1054 = vmax.xlane.f32.xlu0 %v1053
        %v1055 = vpop.xlane.xlu0 %1054
        %v1056 = vsel %vm1052, %v418, -inf
        %1057 = vmax.xlane.f32.xlu0 %v1056
        %v1058 = vpop.xlane.xlu0 %1057
        %v1059 = vsel %vm1052, %v419, -inf
        %1060 = vmax.xlane.f32.xlu0 %v1059
        %v1061 = vpop.xlane.xlu0 %1060
        %v1062 = vsel %vm1052, %v420, -inf
        %1063 = vmax.xlane.f32.xlu0 %v1062
        %v1064 = vpop.xlane.xlu0 %1063
        %vm1065 = vcmask 584704
        %v1066 = vsel %vm1065, %v421, -inf
        %1067 = vmax.xlane.f32.xlu0 %v1066
        %v1068 = vpop.xlane.xlu0 %1067
        %vm1069 = vcmp.eq.f32.partialorder %v417, %v1055
        %vm1070 = vcmp.eq.f32.partialorder %v418, %v1058
        %vm1071 = vcmp.eq.f32.partialorder %v419, %v1061
        %vm1072 = vcmp.eq.f32.partialorder %v420, %v1064
        %vm1073 = vcmp.eq.f32.partialorder %v421, %v1068
        %vm1074 = vmand %vm1069, %vm432
        %vm1075 = vmand %vm1070, %vm433
        %vm1076 = vmand %vm1071, %vm434
        %vm1077 = vmand %vm1072, %vm435
        %vm1078 = vmand %vm1073, %vm436
        %v1079 = vlaneseq
        %v1080 = vand.u32 %v1079, 127
        %v1081 = vcvt.s32.f32 %v1080
        %v1082 = vsel %vm1074, %v1081, 72.0
        %v1083 = vsel %vm1075, %v1081, 72.0
        %v1084 = vsel %vm1076, %v1081, 72.0
        %v1085 = vsel %vm1077, %v1081, 72.0
        %v1086 = vsel %vm1078, %v1081, 72.0
        %v1087 = vsel %vm1052, %v1082, inf
        %1088 = vmin.xlane.f32.xlu0 %v1087
        %v1089 = vpop.xlane.xlu0 %1088
        %v1090 = vsel %vm1052, %v1083, inf
        %1091 = vmin.xlane.f32.xlu0 %v1090
        %v1092 = vpop.xlane.xlu0 %1091
        %v1093 = vsel %vm1052, %v1084, inf
        %1094 = vmin.xlane.f32.xlu0 %v1093
        %v1095 = vpop.xlane.xlu0 %1094
        %v1096 = vsel %vm1052, %v1085, inf
        %1097 = vmin.xlane.f32.xlu0 %v1096
        %v1098 = vpop.xlane.xlu0 %1097
        %v1099 = vsel %vm1065, %v1086, inf
        %1100 = vmin.xlane.f32.xlu0 %v1099
        %v1101 = vpop.xlane.xlu0 %1100
        %vm1102 = vcmp.eq.f32.partialorder %v1081, %v1089
        %vm1103 = vcmp.eq.f32.partialorder %v1081, %v1092
        %vm1104 = vcmp.eq.f32.partialorder %v1081, %v1095
        %vm1105 = vcmp.eq.f32.partialorder %v1081, %v1098
        %vm1106 = vcmp.eq.f32.partialorder %v1081, %v1101
        %v1107 = vsel %vm1102, 1, 0
        %v1108 = vsel %vm1103, 1, 0
        %v1109 = vsel %vm1104, 1, 0
        %v1110 = vsel %vm1105, 1, 0
        %v1111 = vsel %vm1106, 1, 0
        %v1112 = vcvt.s32.f32 %v1107
        %v1113 = vcvt.s32.f32 %v1108
        %v1114 = vcvt.s32.f32 %v1109
        %v1115 = vcvt.s32.f32 %v1110
        %v1116 = vcvt.s32.f32 %v1111
        %v1117 = vpack.c.bf16 %v1113, %v1112
        %v1118 = vpack.c.bf16 %v1115, %v1114
        %v1119 = vpack.c.bf16 %v1116, %v1116
        %v1121 = vsel %vm1052, %v1117, 0
        %v1124 = vsel %vm1052, %v1118, 0
        %v1127 = vsel %vm1052, %v1119, 0
        %vm1129 = vcmask 1043456
        %v1131 = vsel %vm1129, %v1051, 0
        %1133 = vmatpush.bf16.msra.mxu0 0
        %1134 = vmatpush.bf16.msra.mxu0 0
        %1135 = vmatpush.bf16.msra.mxu0 0
        %1136 = vmatpush.bf16.msra.mxu0 %v1131
        %1137 = vmatpush.bf16.msra.mxu0 %v1050
        %1138 = vmatpush.bf16.msra.mxu0 %v1049
        %1139 = vmatpush.bf16.msra.mxu0 %v1048
        %1140 = vmatpush.bf16.msra.mxu0 %v1047
        %1141 = vmatmul.bf16.gmra.mxu0 %v1121
        %v1142 = vpop.f32.mrf.mxu0
        %v1143 = vadd.f32 0.0, %v1142
        %v1144 = vpop.f32.mrf.mxu0
        %v1145 = vadd.f32 0.0, %v1144
        %1146 = vmatmul.bf16.gmra.mxu0 %v1124
        %v1147 = vpop.f32.mrf.mxu0
        %v1148 = vadd.f32 0.0, %v1147
        %v1149 = vpop.f32.mrf.mxu0
        %v1150 = vadd.f32 0.0, %v1149
        %1151 = vmatmul.bf16.gmra.mxu0 %v1127
        %v1152 = vpop.f32.mrf.mxu0
        %v1153 = vadd.f32 0.0, %v1152
        %v1154 = vpop.f32.mrf.mxu0
        %1155 = vdwg.mxu0
        %v1156 = vpack.c.bf16 %v1145, %v1143
        %v1157 = vpack.c.bf16 %v1150, %v1148
        %v1158 = vpack.c.bf16 %v1153, %v1153
        %1159 = vmatpush.bf16.xpose.msra.mxu0 0
        %1160 = vmatpush.bf16.xpose.msra.mxu0 0
        %1161 = vmatpush.bf16.xpose.msra.mxu0 0
        %1162 = vmatpush.bf16.xpose.msra.mxu0 %v1051
        %1163 = vmatpush.bf16.xpose.msra.mxu0 %v1050
        %1164 = vmatpush.bf16.xpose.msra.mxu0 %v1049
        %1165 = vmatpush.bf16.xpose.msra.mxu0 %v1048
        %1166 = vmatpush.bf16.xpose.msra.mxu0 %v1047
        %1167 = vmatmul.bf16.gmra.mxu0 %v1156
        %v1168 = vpop.f32.mrf.mxu0
        %v1169 = vadd.f32 0.0, %v1168
        %v1170 = vpop.f32.mrf.mxu0
        %v1171 = vadd.f32 0.0, %v1170
        %1172 = vmatmul.bf16.gmra.mxu0 %v1157
        %v1173 = vpop.f32.mrf.mxu0
        %v1174 = vadd.f32 0.0, %v1173
        %v1175 = vpop.f32.mrf.mxu0
        %v1176 = vadd.f32 0.0, %v1175
        %1177 = vmatmul.bf16.gmra.mxu0 %v1158
        %v1178 = vpop.f32.mrf.mxu0
        %v1179 = vadd.f32 0.0, %v1178
        %v1180 = vpop.f32.mrf.mxu0
        %1181 = vdwg.mxu0
        %v1182 = vmul.f32 %v1169, 0.088388346
        %v1183 = vmul.f32 %v1171, 0.088388346
        %v1184 = vmul.f32 %v1174, 0.088388346
        %v1185 = vmul.f32 %v1176, 0.088388346
        %v1186 = vmul.f32 %v1179, 0.088388346
        %v1187 = vsel %vm432, %v1182, -1e+30
        %v1188 = vsel %vm433, %v1183, -1e+30
        %v1189 = vsel %vm434, %v1184, -1e+30
        %v1190 = vsel %vm435, %v1185, -1e+30
        %v1191 = vsel %vm436, %v1186, -1e+30
        %v1192 = vsel %vm1052, %v1187, -inf
        %1193 = vmax.xlane.f32.xlu0 %v1192
        %v1194 = vpop.xlane.xlu0 %1193
        %v1195 = vsel %vm1052, %v1188, -inf
        %1196 = vmax.xlane.f32.xlu0 %v1195
        %v1197 = vpop.xlane.xlu0 %1196
        %v1198 = vsel %vm1052, %v1189, -inf
        %1199 = vmax.xlane.f32.xlu0 %v1198
        %v1200 = vpop.xlane.xlu0 %1199
        %v1201 = vsel %vm1052, %v1190, -inf
        %1202 = vmax.xlane.f32.xlu0 %v1201
        %v1203 = vpop.xlane.xlu0 %1202
        %v1204 = vsel %vm1065, %v1191, -inf
        %1205 = vmax.xlane.f32.xlu0 %v1204
        %v1206 = vpop.xlane.xlu0 %1205
        %v1207 = vsub.f32 %v1187, %v1194
        %v1208 = vsub.f32 %v1188, %v1197
        %v1209 = vsub.f32 %v1189, %v1200
        %v1210 = vsub.f32 %v1190, %v1203
        %v1211 = vsub.f32 %v1191, %v1206
        %v1212 = vmul.f32 %v1207, 1.442695
        %v1213 = vpow.pop %v1212
        %v1214 = vmul.f32 %v1208, 1.442695
        %v1215 = vpow.pop %v1214
        %v1216 = vmul.f32 %v1209, 1.442695
        %v1217 = vpow.pop %v1216
        %v1218 = vmul.f32 %v1210, 1.442695
        %v1219 = vpow.pop %v1218
        %v1220 = vmul.f32 %v1211, 1.442695
        %v1221 = vpow.pop %v1220
        %v1222 = vsel %vm1052, %v1213, 0.0
        %1223 = vadd.xlane.f32.xlu0 %v1222
        %v1224 = vpop.xlane.xlu0 %1223
        %v1225 = vsel %vm1052, %v1215, 0.0
        %1226 = vadd.xlane.f32.xlu0 %v1225
        %v1227 = vpop.xlane.xlu0 %1226
        %v1228 = vsel %vm1052, %v1217, 0.0
        %1229 = vadd.xlane.f32.xlu0 %v1228
        %v1230 = vpop.xlane.xlu0 %1229
        %v1231 = vsel %vm1052, %v1219, 0.0
        %1232 = vadd.xlane.f32.xlu0 %v1231
        %v1233 = vpop.xlane.xlu0 %1232
        %v1234 = vsel %vm1065, %v1221, 0.0
        %1235 = vadd.xlane.f32.xlu0 %v1234
        %v1236 = vpop.xlane.xlu0 %1235
        %v1237 = vrcp.pop %v1224
        %v1238 = vrcp.pop %v1227
        %v1239 = vrcp.pop %v1230
        %v1240 = vrcp.pop %v1233
        %v1241 = vrcp.pop %v1236
        %v1242 = vmul.f32 %v1213, %v1237
        %v1243 = vmul.f32 %v1215, %v1238
        %v1244 = vmul.f32 %v1217, %v1239
        %v1245 = vmul.f32 %v1219, %v1240
        %v1246 = vmul.f32 %v1221, %v1241
        %v1247 = vpack.c.bf16 %v1242, %v1242
        %v1248 = vpack.c.bf16 %v1243, %v1243
        %v1249 = vpack.c.bf16 %v1244, %v1244
        %v1250 = vpack.c.bf16 %v1245, %v1245
        %v1251 = vpack.c.bf16 %v1246, %v1246
        %v1257 = vunpack.c.l.b16 %v1247
        %v1258 = vunpack.c.l.b16 %v1248
        %v1259 = vunpack.c.l.b16 %v1249
        %v1260 = vunpack.c.l.b16 %v1250
        %v1261 = vunpack.c.l.b16 %v1251
        %v1262 = vpack.c.b16 %v1258, %v1257
        %v1263 = vpack.c.b16 %v1260, %v1259
        %v1264 = vpack.c.b16 %v1261, %v1261
        %v1266 = vsel %vm1052, %v1262, 0
        %v1269 = vsel %vm1052, %v1263, 0
        %v1272 = vsel %vm1052, %v1264, 0
        %v1275 = vsel %vm1129, %v575, 0
        %v1278 = vsel %vm1129, %v576, 0
        %v1281 = vsel %vm1129, %v577, 0
        %v1284 = vsel %vm1129, %v578, 0
        %1286 = vmatpush.bf16.msra.mxu0 0
        %1287 = vmatpush.bf16.msra.mxu0 0
        %1288 = vmatpush.bf16.msra.mxu0 0
        %1289 = vmatpush.bf16.msra.mxu0 %v1275
        %1290 = vmatpush.bf16.msra.mxu0 %v571
        %1291 = vmatpush.bf16.msra.mxu0 %v567
        %1292 = vmatpush.bf16.msra.mxu0 %v563
        %1293 = vmatpush.bf16.msra.mxu0 %v559
        %1294 = vmatmul.bf16.gmra.mxu0 %v1266
        %v1295 = vpop.f32.mrf.mxu0
        %v1296 = vadd.f32 0.0, %v1295
        %v1297 = vpop.f32.mrf.mxu0
        %v1298 = vadd.f32 0.0, %v1297
        %1299 = vmatmul.bf16.gmra.mxu0 %v1269
        %v1300 = vpop.f32.mrf.mxu0
        %v1301 = vadd.f32 0.0, %v1300
        %v1302 = vpop.f32.mrf.mxu0
        %v1303 = vadd.f32 0.0, %v1302
        %1304 = vmatmul.bf16.gmra.mxu0 %v1272
        %v1305 = vpop.f32.mrf.mxu0
        %v1306 = vadd.f32 0.0, %v1305
        %v1307 = vpop.f32.mrf.mxu0
        %1308 = vdwg.mxu0
        %1309 = vmatpush.bf16.msra.mxu0 0
        %1310 = vmatpush.bf16.msra.mxu0 0
        %1311 = vmatpush.bf16.msra.mxu0 0
        %1312 = vmatpush.bf16.msra.mxu0 %v1278
        %1313 = vmatpush.bf16.msra.mxu0 %v572
        %1314 = vmatpush.bf16.msra.mxu0 %v568
        %1315 = vmatpush.bf16.msra.mxu0 %v564
        %1316 = vmatpush.bf16.msra.mxu0 %v560
        %1317 = vmatmul.bf16.gmra.mxu0 %v1266
        %v1318 = vpop.f32.mrf.mxu0
        %v1319 = vadd.f32 0.0, %v1318
        %v1320 = vpop.f32.mrf.mxu0
        %v1321 = vadd.f32 0.0, %v1320
        %1322 = vmatmul.bf16.gmra.mxu0 %v1269
        %v1323 = vpop.f32.mrf.mxu0
        %v1324 = vadd.f32 0.0, %v1323
        %v1325 = vpop.f32.mrf.mxu0
        %v1326 = vadd.f32 0.0, %v1325
        %1327 = vmatmul.bf16.gmra.mxu0 %v1272
        %v1328 = vpop.f32.mrf.mxu0
        %v1329 = vadd.f32 0.0, %v1328
        %v1330 = vpop.f32.mrf.mxu0
        %1331 = vdwg.mxu0
        %1332 = vmatpush.bf16.msra.mxu0 0
        %1333 = vmatpush.bf16.msra.mxu0 0
        %1334 = vmatpush.bf16.msra.mxu0 0
        %1335 = vmatpush.bf16.msra.mxu0 %v1281
        %1336 = vmatpush.bf16.msra.mxu0 %v573
        %1337 = vmatpush.bf16.msra.mxu0 %v569
        %1338 = vmatpush.bf16.msra.mxu0 %v565
        %1339 = vmatpush.bf16.msra.mxu0 %v561
        %1340 = vmatmul.bf16.gmra.mxu0 %v1266
        %v1341 = vpop.f32.mrf.mxu0
        %v1342 = vadd.f32 0.0, %v1341
        %v1343 = vpop.f32.mrf.mxu0
        %v1344 = vadd.f32 0.0, %v1343
        %1345 = vmatmul.bf16.gmra.mxu0 %v1269
        %v1346 = vpop.f32.mrf.mxu0
        %v1347 = vadd.f32 0.0, %v1346
        %v1348 = vpop.f32.mrf.mxu0
        %v1349 = vadd.f32 0.0, %v1348
        %1350 = vmatmul.bf16.gmra.mxu0 %v1272
        %v1351 = vpop.f32.mrf.mxu0
        %v1352 = vadd.f32 0.0, %v1351
        %v1353 = vpop.f32.mrf.mxu0
        %1354 = vdwg.mxu0
        %1355 = vmatpush.bf16.msra.mxu0 0
        %1356 = vmatpush.bf16.msra.mxu0 0
        %1357 = vmatpush.bf16.msra.mxu0 0
        %1358 = vmatpush.bf16.msra.mxu0 %v1284
        %1359 = vmatpush.bf16.msra.mxu0 %v574
        %1360 = vmatpush.bf16.msra.mxu0 %v570
        %1361 = vmatpush.bf16.msra.mxu0 %v566
        %1362 = vmatpush.bf16.msra.mxu0 %v562
        %1363 = vmatmul.bf16.gmra.mxu0 %v1266
        %v1364 = vpop.f32.mrf.mxu0
        %v1365 = vadd.f32 0.0, %v1364
        %v1366 = vpop.f32.mrf.mxu0
        %v1367 = vadd.f32 0.0, %v1366
        %1368 = vmatmul.bf16.gmra.mxu0 %v1269
        %v1369 = vpop.f32.mrf.mxu0
        %v1370 = vadd.f32 0.0, %v1369
        %v1371 = vpop.f32.mrf.mxu0
        %v1372 = vadd.f32 0.0, %v1371
        %1373 = vmatmul.bf16.gmra.mxu0 %v1272
        %v1374 = vpop.f32.mrf.mxu0
        %v1375 = vadd.f32 0.0, %v1374
        %v1376 = vpop.f32.mrf.mxu0
        %1377 = vdwg.mxu0
        %1378 = vst.msk [vmem:[%s397] sm:$0xf] %vm1065, %v1247
        %1379 = vst.msk [vmem:[%s397 + $0x4] sm:$0xf] %vm1065, %v1248
        %1380 = vst.msk [vmem:[%s397 + $0x8] sm:$0xf] %vm1065, %v1249
        %1381 = vst.msk [vmem:[%s397 + $0xc] sm:$0xf] %vm1065, %v1250
        %vm1382 = vcmask 582656
        %1383 = vst.msk [vmem:[%s397 + $0x10] sm:$0x3] %vm1382, %v1251
        %1384 = vst [vmem:[%s392] sm:$0xff] %v1296
        %1385 = vst [vmem:[%s392 + $0x8] sm:$0xff] %v1319
        %1386 = vst [vmem:[%s392 + $0x10] sm:$0xff] %v1342
        %1387 = vst [vmem:[%s392 + $0x18] sm:$0xff] %v1365
        %1388 = vst [vmem:[%s392 + $0x20] sm:$0xff] %v1298
        %1389 = vst [vmem:[%s392 + $0x28] sm:$0xff] %v1321
        %1390 = vst [vmem:[%s392 + $0x30] sm:$0xff] %v1344
        %1391 = vst [vmem:[%s392 + $0x38] sm:$0xff] %v1367
        %1392 = vst [vmem:[%s392 + $0x40] sm:$0xff] %v1301
        %1393 = vst [vmem:[%s392 + $0x48] sm:$0xff] %v1324
        %1394 = vst [vmem:[%s392 + $0x50] sm:$0xff] %v1347
        %1395 = vst [vmem:[%s392 + $0x58] sm:$0xff] %v1370
        %1396 = vst [vmem:[%s392 + $0x60] sm:$0xff] %v1303
        %1397 = vst [vmem:[%s392 + $0x68] sm:$0xff] %v1326
        %1398 = vst [vmem:[%s392 + $0x70] sm:$0xff] %v1349
        %1399 = vst [vmem:[%s392 + $0x78] sm:$0xff] %v1372
        %1400 = vst [vmem:[%s392 + $0x80] sm:$0xf] %v1306
        %1401 = vst [vmem:[%s392 + $0x88] sm:$0xf] %v1329
        %1402 = vst [vmem:[%s392 + $0x90] sm:$0xf] %v1352
        %1403 = vst [vmem:[%s392 + $0x98] sm:$0xf] %v1375
        %p1404 = scmp.lt.s32.totalorder %s24, 1
        %s1405 = scalar_select %p1404, %s24, 1
        %s1406 = smul.addr %s1405, 20
        %s1407 = smul.addr %s1406, 8
        %s1408 = scalar_lea.vmem %s7, %s1407
        %p1409 = scmp.lt.s32.totalorder %s24, 1
        %s1410 = scalar_select %p1409, %s24, 1
        %s1411 = smul.addr %s1410, 5
        %s1412 = smul.addr %s1411, 4
        %s1413 = scalar_lea.vmem %s8, %s1412
        // Predicated region
        $region57: #{tpu_custom_call.1} parent=47 // pred_check
          %p1414 = pneg %p204
        $region58: #{tpu_custom_call.1} parent=47 // pred_check_branch
          %1416 = sbr.rel (%p1414) target = $region60
        $region59: #{tpu_custom_call.1} parent=47 // pred_region
          _
        $region60: #{tpu_custom_call.1} parent=47 // pred_fallthru
          _
        // Predicated region
        $region61: #{tpu_custom_call.1} parent=47 // pred_check
          %p1417 = pneg %p230
        $region62: #{tpu_custom_call.1} parent=47 // pred_check_branch
          %1419 = sbr.rel (%p1417) target = $region64
        $region63: #{tpu_custom_call.1} parent=47 // pred_region
          _
        $region64: #{tpu_custom_call.1} parent=47 // pred_fallthru
          _
      $region48: #{tpu_custom_call.1} parent=5 // pred_fallthru
        _
      %p1420 = scmp.le.s32.totalorder 2, %s19
      // Predicated region
      $region65: #{tpu_custom_call.1} parent=5 // pred_check
        %p1421 = pneg %p1420
      $region66: #{tpu_custom_call.1} parent=5 // pred_check_branch
        %1423 = sbr.rel (%p1421) target = $region68
      $region67: #{tpu_custom_call.1} parent=5 // pred_region
        %s1424 = ssub.s32 %s19, 2
        // Predicated region
        $region69: #{tpu_custom_call.1} parent=67 // pred_check
          %p1425 = pneg %p210
        $region70: #{tpu_custom_call.1} parent=67 // pred_check_branch
          %1427 = sbr.rel (%p1425) target = $region72
        $region71: #{tpu_custom_call.1} parent=67 // pred_region
          %p1428 = scmp.lt.s32.totalorder %s25, 1
          %s1429 = scalar_select %p1428, %s25, 1
          %s1430 = smul.addr %s1429, 20
          %s1431 = smul.addr %s1430, 8
          %s1432 = scalar_lea.vmem %s7, %s1431
        $region72: #{tpu_custom_call.1} parent=67 // pred_fallthru
          _
        // Predicated region
        $region73: #{tpu_custom_call.1} parent=67 // pred_check
          %p1433 = pneg %p236
        $region74: #{tpu_custom_call.1} parent=67 // pred_check_branch
          %1435 = sbr.rel (%p1433) target = $region76
        $region75: #{tpu_custom_call.1} parent=67 // pred_region
          %p1436 = scmp.lt.s32.totalorder %s25, 1
          %s1437 = scalar_select %p1436, %s25, 1
          %s1438 = smul.addr %s1437, 5
          %s1439 = smul.addr %s1438, 4
          %s1440 = scalar_lea.vmem %s8, %s1439
        $region76: #{tpu_custom_call.1} parent=67 // pred_fallthru
          _
      $region68: #{tpu_custom_call.1} parent=5 // pred_fallthru
        _
    $region6: #{tpu_custom_call.1} parent=1 // loop_footer
      %s23 = sadd.s32 1, %s19
    $region7: #{tpu_custom_call.1} parent=1 // loop_footer_branch
      %18 = sbr.rel target = $region3
    $region8: #{tpu_custom_call.1} parent=1 // loop_exit
      _
    %1441 = vsyncpa [#allocation3], 1
    %s1442 = scalar_lea.sflag [#allocation3], 1
    %1443 = vsyncpa %s1442, 1
    %1444 = vsyncpa [#allocation5], 1

</llo_original>
